<compile_context>
chip_gen: v6e
topology: v6e:2x2x1
jax: 0.10.0
libtpu: 0.0.40
codegen_flags: <defaults>
</compile_context>

<pallas_src>
import functools

import jax
import jax.numpy as jnp
import numpy as np
from jax.experimental import pallas as pl
from jax.experimental.pallas import tpu as pltpu

EPS = 1e-5


# ----------------------------- Pallas kernel ------------------------------
def _basic_block_kernel(
    xp_ref,     # (N, H+2, (W+2)*Cin)   spatially padded input, lanes = W*Cin
    w1_ref,     # (3, (W+2)*Cin, L)     banded conv1 weights, one matrix per ky
    w2_ref,     # (3, (Wo+2)*Cp, L)     banded conv2 weights
    wsc_ref,    # ((W+2)*Cin, L)        banded 1x1 shortcut (identity band if no proj)
    gsum_ref,   # (L, L)                channel-group sum+broadcast matrix
    g1_ref, b1_ref, g2_ref, b2_ref, gsc_ref, bsc_ref,   # (1, L) lane-tiled BN affine
    out_ref,    # (N*Ho, L)             L = Wo*Cp (lane-dense output)
    *, N, H, W, Cin, Cp, stride, has_proj,
):
    f32 = jnp.float32
    Ho = (H - 1) // stride + 1
    Wo = (W - 1) // stride + 1
    R = N * Ho                      # rows of the lane-dense activation layout
    L = Wo * Cp                     # lanes
    M = N * Ho * Wo                 # BN population size per channel

    xp = xp_ref[...]                # (N, H+2, (W+2)*Cin)
    gsum = gsum_ref[...]            # (L, L)

    def bn(y, g, b):
        # Training-mode BatchNorm: single pass (sum, sum-of-squares) per
        # (w, c) lane; one MXU matmul against `gsum` folds the W groups and
        # broadcasts per-channel totals back across the lane axis.
        s1 = jnp.sum(y, axis=0, keepdims=True)              # (1, L)
        s2 = jnp.sum(y * y, axis=0, keepdims=True)          # (1, L)
        cs1 = jnp.dot(s1, gsum, preferred_element_type=f32)  # per-channel sums, tiled
        cs2 = jnp.dot(s2, gsum, preferred_element_type=f32)
        mean = cs1 * (1.0 / M)
        var = jnp.maximum(cs2 * (1.0 / M) - mean * mean, 0.0)
        inv = jax.lax.rsqrt(var + EPS)
        return (y - mean) * (inv * g) + b

    # ---- conv1 (3 banded matmuls, one per kernel row) -> bn1 -> relu ----
    acc1 = jnp.zeros((R, L), f32)
    for ky in range(3):
        rows = xp[:, ky:ky + stride * (Ho - 1) + 1:stride, :].reshape(R, -1)
        acc1 = acc1 + jnp.dot(rows, w1_ref[ky], preferred_element_type=f32)
    h1 = jnp.maximum(bn(acc1, g1_ref[...], b1_ref[...]), 0.0)        # (R, L)

    # ---- value-level spatial padding of h1 (no VMEM scratch round trip) ----
    zc = jnp.zeros((R, Cp), f32)
    h1w = jnp.concatenate([zc, h1, zc], axis=1)                      # (R, (Wo+2)*Cp)
    h1w = h1w.reshape(N, Ho, (Wo + 2) * Cp)
    zr = jnp.zeros((N, 1, (Wo + 2) * Cp), f32)
    h1p = jnp.concatenate([zr, h1w, zr], axis=1)                     # (N, Ho+2, (Wo+2)*Cp)

    # ---- conv2 (stride 1) -> bn2 ----
    acc2 = jnp.zeros((R, L), f32)
    for ky in range(3):
        rows = h1p[:, ky:ky + Ho, :].reshape(R, -1)
        acc2 = acc2 + jnp.dot(rows, w2_ref[ky], preferred_element_type=f32)
    o2 = bn(acc2, g2_ref[...], b2_ref[...])

    # ---- shortcut: banded 1x1 matmul (identity band when no projection) ----
    rows = xp[:, 1:1 + stride * (Ho - 1) + 1:stride, :].reshape(R, -1)
    sc = jnp.dot(rows, wsc_ref[...], preferred_element_type=f32)
    if has_proj:
        sc = bn(sc, gsc_ref[...], bsc_ref[...])

    out_ref[...] = jnp.maximum(o2 + sc, 0.0)


# ---------------------- wrapper-side weight plumbing -----------------------
def _conv_band(w_oihw, w_in, w_out, stride):
    """(Cout, Cin, 3, 3) conv weights -> (3, w_in*Cin, w_out*Cout) band matrices.

    band[ky][(j*stride + kx)*Cin + ci, j*Cout + co] = w[co, ci, ky, kx]
    """
    cout, cin = int(w_oihw.shape[0]), int(w_oihw.shape[1])
    KX, J, CI, CO = jnp.meshgrid(jnp.arange(3), jnp.arange(w_out),
                                 jnp.arange(cin), jnp.arange(cout), indexing="ij")
    rows = (J * stride + KX) * cin + CI
    cols = J * cout + CO
    w_t = jnp.transpose(jnp.asarray(w_oihw, jnp.float32), (2, 3, 1, 0))  # (ky,kx,ci,co)
    bands = []
    for ky in range(3):
        vals = w_t[ky][KX, CI, CO]
        bands.append(jnp.zeros((w_in * cin, w_out * cout), jnp.float32)
                     .at[rows, cols].set(vals))
    return jnp.stack(bands, axis=0)


def _shortcut_band(w_co_ci, w_in, w_out, stride):
    """(Cout, Cin) 1x1 weights -> (w_in*Cin, w_out*Cout) band; samples padded col 1+j*stride."""
    cout, cin = int(w_co_ci.shape[0]), int(w_co_ci.shape[1])
    J, CI, CO = jnp.meshgrid(jnp.arange(w_out), jnp.arange(cin), jnp.arange(cout),
                             indexing="ij")
    rows = (1 + J * stride) * cin + CI
    cols = J * cout + CO
    vals = jnp.asarray(w_co_ci, jnp.float32).T[CI, CO]
    return jnp.zeros((w_in * cin, w_out * cout), jnp.float32).at[rows, cols].set(vals)


def basic_block_pallas(x_nchw, params, *, stride=1):
    """x_nchw: (N, Cin, H, W) float32. Returns (N, Cp, Ho, Wo) float32."""
    N, Cin, H, W = x_nchw.shape
    Cp = params["w1"].shape[0]                      # planes
    has_proj = (stride != 1) or (Cin != Cp)
    Ho = (H - 1) // stride + 1
    Wo = (W - 1) // stride + 1
    Hp, Wp = H + 2, W + 2
    L = Wo * Cp
    R = N * Ho

    # NCHW -> NHWC, pad spatially by 1, flatten (W, C) onto the lane axis.
    x_nhwc = jnp.transpose(x_nchw, (0, 2, 3, 1)).astype(jnp.float32)
    xp = jnp.pad(x_nhwc, ((0, 0), (1, 1), (1, 1), (0, 0))).reshape(N, Hp, Wp * Cin)

    # Banded weight matrices (layout plumbing only, no kernel compute hoisted).
    w1b = _conv_band(params["w1"], Wp, Wo, stride)
    w2b = _conv_band(params["w2"], Wo + 2, Wo, 1)
    if has_proj:
        wscb = _shortcut_band(params["wsc"][:, :, 0, 0], Wp, Wo, stride)
        gsc, bsc = params["gsc"], params["bsc"]
    else:
        wscb = _shortcut_band(jnp.eye(Cp, dtype=jnp.float32), Wp, Wo, stride)
        gsc = jnp.ones((Cp,), jnp.float32)
        bsc = jnp.zeros((Cp,), jnp.float32)

    # Channel-group sum+broadcast matrix for in-kernel BN statistics.
    lane = jnp.arange(L)
    gsum = (lane[:, None] % Cp == lane[None, :] % Cp).astype(jnp.float32)

    def tiled(p):  # per-channel BN param -> (1, Wo*Cp) lane-tiled
        return jnp.tile(jnp.asarray(p, jnp.float32).reshape(1, Cp), (1, Wo))

    kernel = functools.partial(
        _basic_block_kernel,
        N=N, H=H, W=W, Cin=Cin, Cp=Cp, stride=stride, has_proj=has_proj,
    )

    def full(shape):
        return pl.BlockSpec(shape, lambda i, _s=len(shape): (0,) * _s)

    # TODO(synk): for production ResNet shapes, tile the grid over batch /
    # output rows with a two-pass BN reduction (accumulate sum/sumsq across an
    # "arbitrary" axis, then normalize) so statistics stay global, and cast
    # band weights to bf16 on v6e/v7x; a single grid step is used here because
    # the whole test problem fits comfortably in VMEM.
    out2d = pl.pallas_call(
        kernel,
        out_shape=jax.ShapeDtypeStruct((R, L), jnp.float32),
        grid=(1,),
        in_specs=[
            full((N, Hp, Wp * Cin)),
            full((3, Wp * Cin, L)),
            full((3, (Wo + 2) * Cp, L)),
            full((Wp * Cin, L)),
            full((L, L)),
            full((1, L)), full((1, L)),
            full((1, L)), full((1, L)),
            full((1, L)), full((1, L)),
        ],
        out_specs=full((R, L)),
        compiler_params=pltpu.CompilerParams(dimension_semantics=("arbitrary",)),
    )(
        xp, w1b, w2b, wscb, gsum,
        tiled(params["g1"]), tiled(params["b1"]),
        tiled(params["g2"]), tiled(params["b2"]),
        tiled(gsc), tiled(bsc),
    )

    # (N*Ho, Wo*Cp) -> NHWC -> NCHW
    out_nhwc = out2d.reshape(N, Ho, Wo, Cp)
    return jnp.transpose(out_nhwc, (0, 3, 1, 2))


# ------------------------- pure-JAX reference -------------------------
def _bn_train_ref(y_nchw, gamma, beta):
    mean = jnp.mean(y_nchw, axis=(0, 2, 3), keepdims=True)
    var = jnp.mean((y_nchw - mean) ** 2, axis=(0, 2, 3), keepdims=True)
    g = gamma.reshape(1, -1, 1, 1)
    b = beta.reshape(1, -1, 1, 1)
    return (y_nchw - mean) * jax.lax.rsqrt(var + EPS) * g + b


def basic_block_ref(x, params, *, stride=1):
    dn = ("NCHW", "OIHW", "NCHW")
    conv = lambda inp, w, s, pad: jax.lax.conv_general_dilated(
        inp, w, window_strides=(s, s), padding=pad, dimension_numbers=dn)
    out = jax.nn.relu(_bn_train_ref(conv(x, params["w1"], stride, ((1, 1), (1, 1))),
                                    params["g1"], params["b1"]))
    out = _bn_train_ref(conv(out, params["w2"], 1, ((1, 1), (1, 1))),
                        params["g2"], params["b2"])
    in_planes = x.shape[1]
    planes = params["w1"].shape[0]
    if stride != 1 or in_planes != planes:
        sc = _bn_train_ref(conv(x, params["wsc"], stride, ((0, 0), (0, 0))),
                           params["gsc"], params["bsc"])
    else:
        sc = x
    return jax.nn.relu(out + sc)


# ------------------------------- main ---------------------------------
if __name__ == "__main__":
    in_planes, planes, stride = 4, 8, 1
    N, H, W = 2, 16, 16

    key = jax.random.PRNGKey(0)
    k_x, k_w1, k_w2, k_wsc = jax.random.split(key, 4)

    x = jax.random.normal(k_x, (N, in_planes, H, W), jnp.float32)

    params = {
        "w1": 0.1 * jax.random.normal(k_w1, (planes, in_planes, 3, 3), jnp.float32),
        "g1": jnp.ones((planes,), jnp.float32),
        "b1": jnp.zeros((planes,), jnp.float32),
        "w2": 0.1 * jax.random.normal(k_w2, (planes, planes, 3, 3), jnp.float32),
        "g2": jnp.ones((planes,), jnp.float32),
        "b2": jnp.zeros((planes,), jnp.float32),
        # projection shortcut (in_planes != planes)
        "wsc": 0.1 * jax.random.normal(k_wsc, (planes, in_planes, 1, 1), jnp.float32),
        "gsc": jnp.ones((planes,), jnp.float32),
        "bsc": jnp.zeros((planes,), jnp.float32),
    }

    out = basic_block_pallas(x, params, stride=stride)
    out = jax.block_until_ready(out)

    ref = jax.block_until_ready(basic_block_ref(x, params, stride=stride))
    np.testing.assert_allclose(np.asarray(out), np.asarray(ref), rtol=2e-3, atol=2e-3)

    print("KERNEL_OK")
</pallas_src>

<mosaic_0001>
module attributes {stable_mosaic.version = 11 : i64} {
  func.func @_basic_block_kernel(%arg0: i32, %arg1: memref<2x18x72xf32, #tpu.memory_space<vmem>>, %arg2: memref<3x72x128xf32, #tpu.memory_space<vmem>>, %arg3: memref<3x144x128xf32, #tpu.memory_space<vmem>>, %arg4: memref<72x128xf32, #tpu.memory_space<vmem>>, %arg5: memref<128x128xf32, #tpu.memory_space<vmem>>, %arg6: memref<1x128xf32, #tpu.memory_space<vmem>>, %arg7: memref<1x128xf32, #tpu.memory_space<vmem>>, %arg8: memref<1x128xf32, #tpu.memory_space<vmem>>, %arg9: memref<1x128xf32, #tpu.memory_space<vmem>>, %arg10: memref<1x128xf32, #tpu.memory_space<vmem>>, %arg11: memref<1x128xf32, #tpu.memory_space<vmem>>, %arg12: memref<32x128xf32, #tpu.memory_space<vmem>>) attributes {dimension_semantics = [#tpu.dimension_semantics<arbitrary>], iteration_bounds = array<i64: 1>, scalar_prefetch = 0 : i64, scratch_operands = 0 : i64, tpu.core_type = #tpu.core_type<tc>, window_params = [{pipeline_mode = #tpu.pipeline_mode<synchronous>, transform_indices = @transform_0, window_bounds = array<i64: 2, 18, 72>}, {pipeline_mode = #tpu.pipeline_mode<synchronous>, transform_indices = @transform_1, window_bounds = array<i64: 3, 72, 128>}, {pipeline_mode = #tpu.pipeline_mode<synchronous>, transform_indices = @transform_2, window_bounds = array<i64: 3, 144, 128>}, {pipeline_mode = #tpu.pipeline_mode<synchronous>, transform_indices = @transform_3, window_bounds = array<i64: 72, 128>}, {pipeline_mode = #tpu.pipeline_mode<synchronous>, transform_indices = @transform_4, window_bounds = array<i64: 128, 128>}, {pipeline_mode = #tpu.pipeline_mode<synchronous>, transform_indices = @transform_5, window_bounds = array<i64: 1, 128>}, {pipeline_mode = #tpu.pipeline_mode<synchronous>, transform_indices = @transform_6, window_bounds = array<i64: 1, 128>}, {pipeline_mode = #tpu.pipeline_mode<synchronous>, transform_indices = @transform_7, window_bounds = array<i64: 1, 128>}, {pipeline_mode = #tpu.pipeline_mode<synchronous>, transform_indices = @transform_8, window_bounds = array<i64: 1, 128>}, {pipeline_mode = #tpu.pipeline_mode<synchronous>, transform_indices = @transform_9, window_bounds = array<i64: 1, 128>}, {pipeline_mode = #tpu.pipeline_mode<synchronous>, transform_indices = @transform_10, window_bounds = array<i64: 1, 128>}, {pipeline_mode = #tpu.pipeline_mode<synchronous>, transform_indices = @transform_11, window_bounds = array<i64: 32, 128>}]} {
    %c0 = arith.constant 0 : index
    %c0_0 = arith.constant 0 : index
    %c0_1 = arith.constant 0 : index
    %0 = vector.load %arg1[%c0, %c0_0, %c0_1] : memref<2x18x72xf32, #tpu.memory_space<vmem>>, vector<2x18x72xf32>
    %c0_2 = arith.constant 0 : index
    %c0_3 = arith.constant 0 : index
    %1 = vector.load %arg5[%c0_2, %c0_3] : memref<128x128xf32, #tpu.memory_space<vmem>>, vector<128x128xf32>
    %cst = arith.constant 0.000000e+00 : f32
    %2 = vector.broadcast %cst : f32 to vector<32x128xf32>
    %3 = vector.extract_strided_slice %0 {offsets = [0, 0, 0], sizes = [2, 16, 72], strides = [1, 1, 1]} : vector<2x18x72xf32> to vector<2x16x72xf32>
    %4 = vector.shape_cast %3 : vector<2x16x72xf32> to vector<32x72xf32>
    %c0_4 = arith.constant 0 : index
    %c0_5 = arith.constant 0 : index
    %c0_6 = arith.constant 0 : index
    %5 = vector.load %arg2[%c0_4, %c0_5, %c0_6] : memref<3x72x128xf32, #tpu.memory_space<vmem>>, vector<1x72x128xf32>
    %6 = vector.shape_cast %5 : vector<1x72x128xf32> to vector<72x128xf32>
    %cst_7 = arith.constant dense<0.000000e+00> : vector<32x128xf32>
    %7 = tpu.matmul %4, %6, %cst_7 {dimension_numbers = #tpu.dot_dimension_numbers<[1], [0], [0], [1], [0, 0, 1, 1], [], []>} : vector<32x72xf32>, vector<72x128xf32>, vector<32x128xf32> -> vector<32x128xf32>
    %8 = arith.addf %2, %7 : vector<32x128xf32>
    %9 = vector.extract_strided_slice %0 {offsets = [0, 1, 0], sizes = [2, 16, 72], strides = [1, 1, 1]} : vector<2x18x72xf32> to vector<2x16x72xf32>
    %10 = vector.shape_cast %9 : vector<2x16x72xf32> to vector<32x72xf32>
    %c1 = arith.constant 1 : index
    %c0_8 = arith.constant 0 : index
    %c0_9 = arith.constant 0 : index
    %11 = vector.load %arg2[%c1, %c0_8, %c0_9] : memref<3x72x128xf32, #tpu.memory_space<vmem>>, vector<1x72x128xf32>
    %12 = vector.shape_cast %11 : vector<1x72x128xf32> to vector<72x128xf32>
    %cst_10 = arith.constant dense<0.000000e+00> : vector<32x128xf32>
    %13 = tpu.matmul %10, %12, %cst_10 {dimension_numbers = #tpu.dot_dimension_numbers<[1], [0], [0], [1], [0, 0, 1, 1], [], []>} : vector<32x72xf32>, vector<72x128xf32>, vector<32x128xf32> -> vector<32x128xf32>
    %14 = arith.addf %8, %13 : vector<32x128xf32>
    %15 = vector.extract_strided_slice %0 {offsets = [0, 2, 0], sizes = [2, 16, 72], strides = [1, 1, 1]} : vector<2x18x72xf32> to vector<2x16x72xf32>
    %16 = vector.shape_cast %15 : vector<2x16x72xf32> to vector<32x72xf32>
    %c2 = arith.constant 2 : index
    %c0_11 = arith.constant 0 : index
    %c0_12 = arith.constant 0 : index
    %17 = vector.load %arg2[%c2, %c0_11, %c0_12] : memref<3x72x128xf32, #tpu.memory_space<vmem>>, vector<1x72x128xf32>
    %18 = vector.shape_cast %17 : vector<1x72x128xf32> to vector<72x128xf32>
    %cst_13 = arith.constant dense<0.000000e+00> : vector<32x128xf32>
    %19 = tpu.matmul %16, %18, %cst_13 {dimension_numbers = #tpu.dot_dimension_numbers<[1], [0], [0], [1], [0, 0, 1, 1], [], []>} : vector<32x72xf32>, vector<72x128xf32>, vector<32x128xf32> -> vector<32x128xf32>
    %20 = arith.addf %14, %19 : vector<32x128xf32>
    %c0_14 = arith.constant 0 : index
    %c0_15 = arith.constant 0 : index
    %21 = vector.load %arg6[%c0_14, %c0_15] : memref<1x128xf32, #tpu.memory_space<vmem>>, vector<1x128xf32>
    %c0_16 = arith.constant 0 : index
    %c0_17 = arith.constant 0 : index
    %22 = vector.load %arg7[%c0_16, %c0_17] : memref<1x128xf32, #tpu.memory_space<vmem>>, vector<1x128xf32>
    %cst_18 = arith.constant dense<0.000000e+00> : vector<128xf32>
    %23 = vector.multi_reduction <add>, %20, %cst_18 [0] : vector<32x128xf32> to vector<128xf32>
    %24 = vector.shape_cast %23 : vector<128xf32> to vector<1x128xf32>
    %25 = arith.mulf %20, %20 : vector<32x128xf32>
    %cst_19 = arith.constant dense<0.000000e+00> : vector<128xf32>
    %26 = vector.multi_reduction <add>, %25, %cst_19 [0] : vector<32x128xf32> to vector<128xf32>
    %27 = vector.shape_cast %26 : vector<128xf32> to vector<1x128xf32>
    %cst_20 = arith.constant dense<0.000000e+00> : vector<1x128xf32>
    %28 = tpu.matmul %24, %1, %cst_20 {dimension_numbers = #tpu.dot_dimension_numbers<[1], [0], [0], [1], [0, 0, 1, 1], [], []>} : vector<1x128xf32>, vector<128x128xf32>, vector<1x128xf32> -> vector<1x128xf32>
    %cst_21 = arith.constant dense<0.000000e+00> : vector<1x128xf32>
    %29 = tpu.matmul %27, %1, %cst_21 {dimension_numbers = #tpu.dot_dimension_numbers<[1], [0], [0], [1], [0, 0, 1, 1], [], []>} : vector<1x128xf32>, vector<128x128xf32>, vector<1x128xf32> -> vector<1x128xf32>
    %cst_22 = arith.constant 0.001953125 : f32
    %30 = vector.broadcast %cst_22 : f32 to vector<1x128xf32>
    %31 = arith.mulf %28, %30 : vector<1x128xf32>
    %cst_23 = arith.constant 0.001953125 : f32
    %32 = vector.broadcast %cst_23 : f32 to vector<1x128xf32>
    %33 = arith.mulf %29, %32 : vector<1x128xf32>
    %34 = arith.mulf %31, %31 : vector<1x128xf32>
    %35 = arith.subf %33, %34 : vector<1x128xf32>
    %cst_24 = arith.constant 0.000000e+00 : f32
    %36 = vector.broadcast %cst_24 : f32 to vector<1x128xf32>
    %37 = arith.maximumf %35, %36 : vector<1x128xf32>
    %cst_25 = arith.constant 9.99999974E-6 : f32
    %38 = vector.broadcast %cst_25 : f32 to vector<1x128xf32>
    %39 = arith.addf %37, %38 : vector<1x128xf32>
    %40 = math.rsqrt %39 : vector<1x128xf32>
    %41 = vector.broadcast %31 : vector<1x128xf32> to vector<32x128xf32>
    %42 = arith.subf %20, %41 : vector<32x128xf32>
    %43 = arith.mulf %40, %21 : vector<1x128xf32>
    %44 = vector.broadcast %43 : vector<1x128xf32> to vector<32x128xf32>
    %45 = arith.mulf %42, %44 : vector<32x128xf32>
    %46 = vector.broadcast %22 : vector<1x128xf32> to vector<32x128xf32>
    %47 = arith.addf %45, %46 : vector<32x128xf32>
    %cst_26 = arith.constant 0.000000e+00 : f32
    %48 = vector.broadcast %cst_26 : f32 to vector<32x128xf32>
    %49 = arith.maximumf %47, %48 : vector<32x128xf32>
    %cst_27 = arith.constant 0.000000e+00 : f32
    %50 = vector.broadcast %cst_27 : f32 to vector<32x8xf32>
    %51 = tpu.concatenate %50, %49, %50 in 1 : vector<32x8xf32>, vector<32x128xf32>, vector<32x8xf32> -> vector<32x144xf32>
    %52 = vector.shape_cast %51 : vector<32x144xf32> to vector<2x16x144xf32>
    %cst_28 = arith.constant 0.000000e+00 : f32
    %53 = vector.broadcast %cst_28 : f32 to vector<2x1x144xf32>
    %54 = tpu.concatenate %53, %52, %53 in 1 : vector<2x1x144xf32>, vector<2x16x144xf32>, vector<2x1x144xf32> -> vector<2x18x144xf32>
    %cst_29 = arith.constant 0.000000e+00 : f32
    %55 = vector.broadcast %cst_29 : f32 to vector<32x128xf32>
    %56 = vector.extract_strided_slice %54 {offsets = [0, 0, 0], sizes = [2, 16, 144], strides = [1, 1, 1]} : vector<2x18x144xf32> to vector<2x16x144xf32>
    %57 = vector.shape_cast %56 : vector<2x16x144xf32> to vector<32x144xf32>
    %c0_30 = arith.constant 0 : index
    %c0_31 = arith.constant 0 : index
    %c0_32 = arith.constant 0 : index
    %58 = vector.load %arg3[%c0_30, %c0_31, %c0_32] : memref<3x144x128xf32, #tpu.memory_space<vmem>>, vector<1x144x128xf32>
    %59 = vector.shape_cast %58 : vector<1x144x128xf32> to vector<144x128xf32>
    %cst_33 = arith.constant dense<0.000000e+00> : vector<32x128xf32>
    %60 = tpu.matmul %57, %59, %cst_33 {dimension_numbers = #tpu.dot_dimension_numbers<[1], [0], [0], [1], [0, 0, 1, 1], [], []>} : vector<32x144xf32>, vector<144x128xf32>, vector<32x128xf32> -> vector<32x128xf32>
    %61 = arith.addf %55, %60 : vector<32x128xf32>
    %62 = vector.extract_strided_slice %54 {offsets = [0, 1, 0], sizes = [2, 16, 144], strides = [1, 1, 1]} : vector<2x18x144xf32> to vector<2x16x144xf32>
    %63 = vector.shape_cast %62 : vector<2x16x144xf32> to vector<32x144xf32>
    %c1_34 = arith.constant 1 : index
    %c0_35 = arith.constant 0 : index
    %c0_36 = arith.constant 0 : index
    %64 = vector.load %arg3[%c1_34, %c0_35, %c0_36] : memref<3x144x128xf32, #tpu.memory_space<vmem>>, vector<1x144x128xf32>
    %65 = vector.shape_cast %64 : vector<1x144x128xf32> to vector<144x128xf32>
    %cst_37 = arith.constant dense<0.000000e+00> : vector<32x128xf32>
    %66 = tpu.matmul %63, %65, %cst_37 {dimension_numbers = #tpu.dot_dimension_numbers<[1], [0], [0], [1], [0, 0, 1, 1], [], []>} : vector<32x144xf32>, vector<144x128xf32>, vector<32x128xf32> -> vector<32x128xf32>
    %67 = arith.addf %61, %66 : vector<32x128xf32>
    %68 = vector.extract_strided_slice %54 {offsets = [0, 2, 0], sizes = [2, 16, 144], strides = [1, 1, 1]} : vector<2x18x144xf32> to vector<2x16x144xf32>
    %69 = vector.shape_cast %68 : vector<2x16x144xf32> to vector<32x144xf32>
    %c2_38 = arith.constant 2 : index
    %c0_39 = arith.constant 0 : index
    %c0_40 = arith.constant 0 : index
    %70 = vector.load %arg3[%c2_38, %c0_39, %c0_40] : memref<3x144x128xf32, #tpu.memory_space<vmem>>, vector<1x144x128xf32>
    %71 = vector.shape_cast %70 : vector<1x144x128xf32> to vector<144x128xf32>
    %cst_41 = arith.constant dense<0.000000e+00> : vector<32x128xf32>
    %72 = tpu.matmul %69, %71, %cst_41 {dimension_numbers = #tpu.dot_dimension_numbers<[1], [0], [0], [1], [0, 0, 1, 1], [], []>} : vector<32x144xf32>, vector<144x128xf32>, vector<32x128xf32> -> vector<32x128xf32>
    %73 = arith.addf %67, %72 : vector<32x128xf32>
    %c0_42 = arith.constant 0 : index
    %c0_43 = arith.constant 0 : index
    %74 = vector.load %arg8[%c0_42, %c0_43] : memref<1x128xf32, #tpu.memory_space<vmem>>, vector<1x128xf32>
    %c0_44 = arith.constant 0 : index
    %c0_45 = arith.constant 0 : index
    %75 = vector.load %arg9[%c0_44, %c0_45] : memref<1x128xf32, #tpu.memory_space<vmem>>, vector<1x128xf32>
    %cst_46 = arith.constant dense<0.000000e+00> : vector<128xf32>
    %76 = vector.multi_reduction <add>, %73, %cst_46 [0] : vector<32x128xf32> to vector<128xf32>
    %77 = vector.shape_cast %76 : vector<128xf32> to vector<1x128xf32>
    %78 = arith.mulf %73, %73 : vector<32x128xf32>
    %cst_47 = arith.constant dense<0.000000e+00> : vector<128xf32>
    %79 = vector.multi_reduction <add>, %78, %cst_47 [0] : vector<32x128xf32> to vector<128xf32>
    %80 = vector.shape_cast %79 : vector<128xf32> to vector<1x128xf32>
    %cst_48 = arith.constant dense<0.000000e+00> : vector<1x128xf32>
    %81 = tpu.matmul %77, %1, %cst_48 {dimension_numbers = #tpu.dot_dimension_numbers<[1], [0], [0], [1], [0, 0, 1, 1], [], []>} : vector<1x128xf32>, vector<128x128xf32>, vector<1x128xf32> -> vector<1x128xf32>
    %cst_49 = arith.constant dense<0.000000e+00> : vector<1x128xf32>
    %82 = tpu.matmul %80, %1, %cst_49 {dimension_numbers = #tpu.dot_dimension_numbers<[1], [0], [0], [1], [0, 0, 1, 1], [], []>} : vector<1x128xf32>, vector<128x128xf32>, vector<1x128xf32> -> vector<1x128xf32>
    %cst_50 = arith.constant 0.001953125 : f32
    %83 = vector.broadcast %cst_50 : f32 to vector<1x128xf32>
    %84 = arith.mulf %81, %83 : vector<1x128xf32>
    %cst_51 = arith.constant 0.001953125 : f32
    %85 = vector.broadcast %cst_51 : f32 to vector<1x128xf32>
    %86 = arith.mulf %82, %85 : vector<1x128xf32>
    %87 = arith.mulf %84, %84 : vector<1x128xf32>
    %88 = arith.subf %86, %87 : vector<1x128xf32>
    %cst_52 = arith.constant 0.000000e+00 : f32
    %89 = vector.broadcast %cst_52 : f32 to vector<1x128xf32>
    %90 = arith.maximumf %88, %89 : vector<1x128xf32>
    %cst_53 = arith.constant 9.99999974E-6 : f32
    %91 = vector.broadcast %cst_53 : f32 to vector<1x128xf32>
    %92 = arith.addf %90, %91 : vector<1x128xf32>
    %93 = math.rsqrt %92 : vector<1x128xf32>
    %94 = vector.broadcast %84 : vector<1x128xf32> to vector<32x128xf32>
    %95 = arith.subf %73, %94 : vector<32x128xf32>
    %96 = arith.mulf %93, %74 : vector<1x128xf32>
    %97 = vector.broadcast %96 : vector<1x128xf32> to vector<32x128xf32>
    %98 = arith.mulf %95, %97 : vector<32x128xf32>
    %99 = vector.broadcast %75 : vector<1x128xf32> to vector<32x128xf32>
    %100 = arith.addf %98, %99 : vector<32x128xf32>
    %101 = vector.extract_strided_slice %0 {offsets = [0, 1, 0], sizes = [2, 16, 72], strides = [1, 1, 1]} : vector<2x18x72xf32> to vector<2x16x72xf32>
    %102 = vector.shape_cast %101 : vector<2x16x72xf32> to vector<32x72xf32>
    %c0_54 = arith.constant 0 : index
    %c0_55 = arith.constant 0 : index
    %103 = vector.load %arg4[%c0_54, %c0_55] : memref<72x128xf32, #tpu.memory_space<vmem>>, vector<72x128xf32>
    %cst_56 = arith.constant dense<0.000000e+00> : vector<32x128xf32>
    %104 = tpu.matmul %102, %103, %cst_56 {dimension_numbers = #tpu.dot_dimension_numbers<[1], [0], [0], [1], [0, 0, 1, 1], [], []>} : vector<32x72xf32>, vector<72x128xf32>, vector<32x128xf32> -> vector<32x128xf32>
    %c0_57 = arith.constant 0 : index
    %c0_58 = arith.constant 0 : index
    %105 = vector.load %arg10[%c0_57, %c0_58] : memref<1x128xf32, #tpu.memory_space<vmem>>, vector<1x128xf32>
    %c0_59 = arith.constant 0 : index
    %c0_60 = arith.constant 0 : index
    %106 = vector.load %arg11[%c0_59, %c0_60] : memref<1x128xf32, #tpu.memory_space<vmem>>, vector<1x128xf32>
    %cst_61 = arith.constant dense<0.000000e+00> : vector<128xf32>
    %107 = vector.multi_reduction <add>, %104, %cst_61 [0] : vector<32x128xf32> to vector<128xf32>
    %108 = vector.shape_cast %107 : vector<128xf32> to vector<1x128xf32>
    %109 = arith.mulf %104, %104 : vector<32x128xf32>
    %cst_62 = arith.constant dense<0.000000e+00> : vector<128xf32>
    %110 = vector.multi_reduction <add>, %109, %cst_62 [0] : vector<32x128xf32> to vector<128xf32>
    %111 = vector.shape_cast %110 : vector<128xf32> to vector<1x128xf32>
    %cst_63 = arith.constant dense<0.000000e+00> : vector<1x128xf32>
    %112 = tpu.matmul %108, %1, %cst_63 {dimension_numbers = #tpu.dot_dimension_numbers<[1], [0], [0], [1], [0, 0, 1, 1], [], []>} : vector<1x128xf32>, vector<128x128xf32>, vector<1x128xf32> -> vector<1x128xf32>
    %cst_64 = arith.constant dense<0.000000e+00> : vector<1x128xf32>
    %113 = tpu.matmul %111, %1, %cst_64 {dimension_numbers = #tpu.dot_dimension_numbers<[1], [0], [0], [1], [0, 0, 1, 1], [], []>} : vector<1x128xf32>, vector<128x128xf32>, vector<1x128xf32> -> vector<1x128xf32>
    %cst_65 = arith.constant 0.001953125 : f32
    %114 = vector.broadcast %cst_65 : f32 to vector<1x128xf32>
    %115 = arith.mulf %112, %114 : vector<1x128xf32>
    %cst_66 = arith.constant 0.001953125 : f32
    %116 = vector.broadcast %cst_66 : f32 to vector<1x128xf32>
    %117 = arith.mulf %113, %116 : vector<1x128xf32>
    %118 = arith.mulf %115, %115 : vector<1x128xf32>
    %119 = arith.subf %117, %118 : vector<1x128xf32>
    %cst_67 = arith.constant 0.000000e+00 : f32
    %120 = vector.broadcast %cst_67 : f32 to vector<1x128xf32>
    %121 = arith.maximumf %119, %120 : vector<1x128xf32>
    %cst_68 = arith.constant 9.99999974E-6 : f32
    %122 = vector.broadcast %cst_68 : f32 to vector<1x128xf32>
    %123 = arith.addf %121, %122 : vector<1x128xf32>
    %124 = math.rsqrt %123 : vector<1x128xf32>
    %125 = vector.broadcast %115 : vector<1x128xf32> to vector<32x128xf32>
    %126 = arith.subf %104, %125 : vector<32x128xf32>
    %127 = arith.mulf %124, %105 : vector<1x128xf32>
    %128 = vector.broadcast %127 : vector<1x128xf32> to vector<32x128xf32>
    %129 = arith.mulf %126, %128 : vector<32x128xf32>
    %130 = vector.broadcast %106 : vector<1x128xf32> to vector<32x128xf32>
    %131 = arith.addf %129, %130 : vector<32x128xf32>
    %132 = arith.addf %100, %131 : vector<32x128xf32>
    %cst_69 = arith.constant 0.000000e+00 : f32
    %133 = vector.broadcast %cst_69 : f32 to vector<32x128xf32>
    %134 = arith.maximumf %132, %133 : vector<32x128xf32>
    %c0_70 = arith.constant 0 : index
    %c0_71 = arith.constant 0 : index
    %135 = vector.load %arg12[%c0_70, %c0_71] : memref<32x128xf32, #tpu.memory_space<vmem>>, vector<32x128xf32>
    tpu.vector_store %arg12[%c0_70, %c0_71], %134 {strides = array<i32>} : memref<32x128xf32, #tpu.memory_space<vmem>>, vector<32x128xf32>,
    return
  }
  func.func @transform_0(%arg0: i32) -> (i32, i32, i32) {
    %c0_i32 = arith.constant 0 : i32
    %c0_i32_0 = arith.constant 0 : i32
    %c0_i32_1 = arith.constant 0 : i32
    %c0_i32_2 = arith.constant 0 : i32
    return %c0_i32, %c0_i32_0, %c0_i32_1 : i32, i32, i32
  }
  func.func @transform_1(%arg0: i32) -> (i32, i32, i32) {
    %c0_i32 = arith.constant 0 : i32
    %c0_i32_0 = arith.constant 0 : i32
    %c0_i32_1 = arith.constant 0 : i32
    %c0_i32_2 = arith.constant 0 : i32
    return %c0_i32, %c0_i32_0, %c0_i32_1 : i32, i32, i32
  }
  func.func @transform_2(%arg0: i32) -> (i32, i32, i32) {
    %c0_i32 = arith.constant 0 : i32
    %c0_i32_0 = arith.constant 0 : i32
    %c0_i32_1 = arith.constant 0 : i32
    %c0_i32_2 = arith.constant 0 : i32
    return %c0_i32, %c0_i32_0, %c0_i32_1 : i32, i32, i32
  }
  func.func @transform_3(%arg0: i32) -> (i32, i32) {
    %c0_i32 = arith.constant 0 : i32
    %c0_i32_0 = arith.constant 0 : i32
    %c0_i32_1 = arith.constant 0 : i32
    return %c0_i32, %c0_i32_0 : i32, i32
  }
  func.func @transform_4(%arg0: i32) -> (i32, i32) {
    %c0_i32 = arith.constant 0 : i32
    %c0_i32_0 = arith.constant 0 : i32
    %c0_i32_1 = arith.constant 0 : i32
    return %c0_i32, %c0_i32_0 : i32, i32
  }
  func.func @transform_5(%arg0: i32) -> (i32, i32) {
    %c0_i32 = arith.constant 0 : i32
    %c0_i32_0 = arith.constant 0 : i32
    %c0_i32_1 = arith.constant 0 : i32
    return %c0_i32, %c0_i32_0 : i32, i32
  }
  func.func @transform_6(%arg0: i32) -> (i32, i32) {
    %c0_i32 = arith.constant 0 : i32
    %c0_i32_0 = arith.constant 0 : i32
    %c0_i32_1 = arith.constant 0 : i32
    return %c0_i32, %c0_i32_0 : i32, i32
  }
  func.func @transform_7(%arg0: i32) -> (i32, i32) {
    %c0_i32 = arith.constant 0 : i32
    %c0_i32_0 = arith.constant 0 : i32
    %c0_i32_1 = arith.constant 0 : i32
    return %c0_i32, %c0_i32_0 : i32, i32
  }
  func.func @transform_8(%arg0: i32) -> (i32, i32) {
    %c0_i32 = arith.constant 0 : i32
    %c0_i32_0 = arith.constant 0 : i32
    %c0_i32_1 = arith.constant 0 : i32
    return %c0_i32, %c0_i32_0 : i32, i32
  }
  func.func @transform_9(%arg0: i32) -> (i32, i32) {
    %c0_i32 = arith.constant 0 : i32
    %c0_i32_0 = arith.constant 0 : i32
    %c0_i32_1 = arith.constant 0 : i32
    return %c0_i32, %c0_i32_0 : i32, i32
  }
  func.func @transform_10(%arg0: i32) -> (i32, i32) {
    %c0_i32 = arith.constant 0 : i32
    %c0_i32_0 = arith.constant 0 : i32
    %c0_i32_1 = arith.constant 0 : i32
    return %c0_i32, %c0_i32_0 : i32, i32
  }
  func.func @transform_11(%arg0: i32) -> (i32, i32) {
    %c0_i32 = arith.constant 0 : i32
    %c0_i32_0 = arith.constant 0 : i32
    %c0_i32_1 = arith.constant 0 : i32
    return %c0_i32, %c0_i32_0 : i32, i32
  }
}

</mosaic_0001>

<llo_original>
// kernel: tpu_custom_call.1
$region0: #{tpu_custom_call.1}
  #allocation0 [shape = 'u32[]', space=smem, size = 0x4, offset = 0x4, fixed_abs, tag = 'smem constant byte address 0x4 - core index']
  #allocation1 [shape = 'u32[144,128]{1,0:T(1,128)}', space=vmem, size = 0x12000, scoped, tag = 'internal scratch']
  %s0 = inlined_call_operand.vmem [shape: f32[2,18,72], index: 0, kind: input, shape index: {}]
  %s1 = inlined_call_operand.hbm [shape: f32[3,72,128], index: 1, kind: input, shape index: {}]
  %s2 = inlined_call_operand.hbm [shape: f32[3,144,128], index: 2, kind: input, shape index: {}]
  %s3 = inlined_call_operand.vmem [shape: f32[72,128], index: 3, kind: input, shape index: {}]
  %s4 = inlined_call_operand.hbm [shape: f32[128,128], index: 4, kind: input, shape index: {}]
  %s5 = inlined_call_operand.vmem [shape: f32[1,128], index: 5, kind: input, shape index: {}]
  %s6 = inlined_call_operand.vmem [shape: f32[1,128], index: 6, kind: input, shape index: {}]
  %s7 = inlined_call_operand.vmem [shape: f32[1,128], index: 7, kind: input, shape index: {}]
  %s8 = inlined_call_operand.vmem [shape: f32[1,128], index: 8, kind: input, shape index: {}]
  %s9 = inlined_call_operand.vmem [shape: f32[1,128], index: 9, kind: input, shape index: {}]
  %s10 = inlined_call_operand.vmem [shape: f32[1,128], index: 10, kind: input, shape index: {}]
  %s11 = inlined_call_operand.hbm [shape: f32[32,128], index: 11, kind: output, shape index: {}]
  %s12 = sld [smem:[#allocation0]]
  $region66: #{tpu_custom_call.1} parent=0
    _
  %s14 = ssub.s32 1, %s12
  %s15 = scalar_select 0, %s14, %s12
  $region1: #{tpu_custom_call.1} parent=0
    #allocation2 [shape = 'u8[110592]{0}', space=vmem, size = 0x1b000, scoped, tag = 'input window, operand 1, single buffered']
    #allocation3 [shape = 's32[1]{0}', space=sflag, size = 0x4, scoped, tag = 'scoped memory for tpu_custom_call.1']
    #allocation4 [shape = 's32[1]{0}', space=sflag, size = 0x4, scoped, tag = 'scoped memory for tpu_custom_call.1']
    #allocation5 [shape = 'u8[221184]{0}', space=vmem, size = 0x36000, scoped, tag = 'input window, operand 2, single buffered']
    #allocation6 [shape = 's32[1]{0}', space=sflag, size = 0x4, scoped, tag = 'scoped memory for tpu_custom_call.1']
    #allocation7 [shape = 'u8[65536]{0}', space=vmem, size = 0x10000, scoped, tag = 'input window, operand 4, single buffered']
    #allocation8 [shape = 'u8[16384]{0}', space=vmem, size = 0x4000, scoped, tag = 'output window, operand 0, single buffered']
    %16 = vsyncpa [#allocation3], 0
    %17 = vsyncpa [#allocation6], 0
    %18 = vsyncpa [#allocation4], 0
    // Predicated region
    $region2: #{tpu_custom_call.1} parent=1 // pred_check
      _
    $region3: #{tpu_custom_call.1} parent=1 // pred_check_branch
      %20 = sbr.rel (0) target = $region5
    $region4: #{tpu_custom_call.1} parent=1 // pred_region
      _
    $region5: #{tpu_custom_call.1} parent=1 // pred_fallthru
      _
    // Predicated region
    $region6: #{tpu_custom_call.1} parent=1 // pred_check
      _
    $region7: #{tpu_custom_call.1} parent=1 // pred_check_branch
      %22 = sbr.rel (0) target = $region9
    $region8: #{tpu_custom_call.1} parent=1 // pred_region
      %s24 = ssub.s32 3456, 3456
      %25 = vsyncadd [#allocation3], %s24
      %s26 = sshll.u32 [#allocation2], 4
      %s27 = int_to_ptr.vmem [resolvable:$true] %s26
      %32 = dma.hbm_to_vmem [thread:$0]  %s1, 3456, %s27, [#allocation3], 128, 128, 8
    $region9: #{tpu_custom_call.1} parent=1 // pred_fallthru
      _
    // Predicated region
    $region10: #{tpu_custom_call.1} parent=1 // pred_check
      _
    $region11: #{tpu_custom_call.1} parent=1 // pred_check_branch
      %34 = sbr.rel (0) target = $region13
    $region12: #{tpu_custom_call.1} parent=1 // pred_region
      %s36 = ssub.s32 6912, 6912
      %37 = vsyncadd [#allocation6], %s36
      %s38 = sshll.u32 [#allocation5], 4
      %s39 = int_to_ptr.vmem [resolvable:$true] %s38
      %44 = dma.hbm_to_vmem [thread:$0]  %s2, 6912, %s39, [#allocation6], 128, 128, 8
    $region13: #{tpu_custom_call.1} parent=1 // pred_fallthru
      _
    // Predicated region
    $region14: #{tpu_custom_call.1} parent=1 // pred_check
      _
    $region15: #{tpu_custom_call.1} parent=1 // pred_check_branch
      %46 = sbr.rel (0) target = $region17
    $region16: #{tpu_custom_call.1} parent=1 // pred_region
      _
    $region17: #{tpu_custom_call.1} parent=1 // pred_fallthru
      _
    // Predicated region
    $region18: #{tpu_custom_call.1} parent=1 // pred_check
      _
    $region19: #{tpu_custom_call.1} parent=1 // pred_check_branch
      %48 = sbr.rel (0) target = $region21
    $region20: #{tpu_custom_call.1} parent=1 // pred_region
      %s50 = ssub.s32 2048, 2048
      %51 = vsyncadd [#allocation6], %s50
      %s52 = sshll.u32 [#allocation7], 4
      %s53 = int_to_ptr.vmem [resolvable:$true] %s52
      %58 = dma.hbm_to_vmem [thread:$0]  %s4, 2048, %s53, [#allocation6], 128, 128, 8
    $region21: #{tpu_custom_call.1} parent=1 // pred_fallthru
      _
    // Predicated region
    $region22: #{tpu_custom_call.1} parent=1 // pred_check
      _
    $region23: #{tpu_custom_call.1} parent=1 // pred_check_branch
      %60 = sbr.rel (0) target = $region25
    $region24: #{tpu_custom_call.1} parent=1 // pred_region
      _
    $region25: #{tpu_custom_call.1} parent=1 // pred_fallthru
      _
    // Predicated region
    $region26: #{tpu_custom_call.1} parent=1 // pred_check
      _
    $region27: #{tpu_custom_call.1} parent=1 // pred_check_branch
      %62 = sbr.rel (0) target = $region29
    $region28: #{tpu_custom_call.1} parent=1 // pred_region
      _
    $region29: #{tpu_custom_call.1} parent=1 // pred_fallthru
      _
    // Predicated region
    $region30: #{tpu_custom_call.1} parent=1 // pred_check
      _
    $region31: #{tpu_custom_call.1} parent=1 // pred_check_branch
      %64 = sbr.rel (0) target = $region33
    $region32: #{tpu_custom_call.1} parent=1 // pred_region
      _
    $region33: #{tpu_custom_call.1} parent=1 // pred_fallthru
      _
    // Predicated region
    $region34: #{tpu_custom_call.1} parent=1 // pred_check
      _
    $region35: #{tpu_custom_call.1} parent=1 // pred_check_branch
      %66 = sbr.rel (0) target = $region37
    $region36: #{tpu_custom_call.1} parent=1 // pred_region
      _
    $region37: #{tpu_custom_call.1} parent=1 // pred_fallthru
      _
    // Predicated region
    $region38: #{tpu_custom_call.1} parent=1 // pred_check
      _
    $region39: #{tpu_custom_call.1} parent=1 // pred_check_branch
      %68 = sbr.rel (0) target = $region41
    $region40: #{tpu_custom_call.1} parent=1 // pred_region
      _
    $region41: #{tpu_custom_call.1} parent=1 // pred_fallthru
      _
    // Predicated region
    $region42: #{tpu_custom_call.1} parent=1 // pred_check
      _
    $region43: #{tpu_custom_call.1} parent=1 // pred_check_branch
      %70 = sbr.rel (0) target = $region45
    $region44: #{tpu_custom_call.1} parent=1 // pred_region
      _
    $region45: #{tpu_custom_call.1} parent=1 // pred_fallthru
      _
    // Predicated region
    $region46: #{tpu_custom_call.1} parent=1 // pred_check
      _
    $region47: #{tpu_custom_call.1} parent=1 // pred_check_branch
      %72 = sbr.rel (0) target = $region49
    $region48: #{tpu_custom_call.1} parent=1 // pred_region
      %73 = dma.done [#allocation3], 3456
    $region49: #{tpu_custom_call.1} parent=1 // pred_fallthru
      _
    // Predicated region
    $region50: #{tpu_custom_call.1} parent=1 // pred_check
      _
    $region51: #{tpu_custom_call.1} parent=1 // pred_check_branch
      %75 = sbr.rel (0) target = $region53
    $region52: #{tpu_custom_call.1} parent=1 // pred_region
      %76 = dma.done [#allocation6], 6912
    $region53: #{tpu_custom_call.1} parent=1 // pred_fallthru
      _
    // Predicated region
    $region54: #{tpu_custom_call.1} parent=1 // pred_check
      _
    $region55: #{tpu_custom_call.1} parent=1 // pred_check_branch
      %78 = sbr.rel (0) target = $region57
    $region56: #{tpu_custom_call.1} parent=1 // pred_region
      %79 = dma.done [#allocation6], 2048
    $region57: #{tpu_custom_call.1} parent=1 // pred_fallthru
      _
    %v80 = vld [vmem:[%s0] sm:$0xff]
    %v81 = vld [vmem:[%s0 + $0x8] sm:$0xff]
    %v82 = vld [vmem:[%s0 + $0x10] sm:$0x3]
    %v83 = vld [vmem:[%s0 + $0x18] sm:$0xff]
    %v84 = vld [vmem:[%s0 + $0x20] sm:$0xff]
    %v85 = vld [vmem:[%s0 + $0x28] sm:$0x3]
    %v86 = vld [vmem:[#allocation7] sm:$0xff]
    %v87 = vld [vmem:[#allocation7 + $0x8] sm:$0xff]
    %v88 = vld [vmem:[#allocation7 + $0x10] sm:$0xff]
    %v89 = vld [vmem:[#allocation7 + $0x18] sm:$0xff]
    %v90 = vld [vmem:[#allocation7 + $0x20] sm:$0xff]
    %v91 = vld [vmem:[#allocation7 + $0x28] sm:$0xff]
    %v92 = vld [vmem:[#allocation7 + $0x30] sm:$0xff]
    %v93 = vld [vmem:[#allocation7 + $0x38] sm:$0xff]
    %v94 = vld [vmem:[#allocation7 + $0x40] sm:$0xff]
    %v95 = vld [vmem:[#allocation7 + $0x48] sm:$0xff]
    %v96 = vld [vmem:[#allocation7 + $0x50] sm:$0xff]
    %v97 = vld [vmem:[#allocation7 + $0x58] sm:$0xff]
    %v98 = vld [vmem:[#allocation7 + $0x60] sm:$0xff]
    %v99 = vld [vmem:[#allocation7 + $0x68] sm:$0xff]
    %v100 = vld [vmem:[#allocation7 + $0x70] sm:$0xff]
    %v101 = vld [vmem:[#allocation7 + $0x78] sm:$0xff]
    %v102 = vld [vmem:[#allocation2] sm:$0xff]
    %v103 = vld [vmem:[#allocation2 + $0x8] sm:$0xff]
    %v104 = vld [vmem:[#allocation2 + $0x10] sm:$0xff]
    %v105 = vld [vmem:[#allocation2 + $0x18] sm:$0xff]
    %v106 = vld [vmem:[#allocation2 + $0x20] sm:$0xff]
    %v107 = vld [vmem:[#allocation2 + $0x28] sm:$0xff]
    %v108 = vld [vmem:[#allocation2 + $0x30] sm:$0xff]
    %v109 = vld [vmem:[#allocation2 + $0x38] sm:$0xff]
    %v110 = vld [vmem:[#allocation2 + $0x40] sm:$0xff]
    %vm117 = vcmask 1046528
    %v118 = vrot.slane %v80, 1
    %v119 = vrot.slane %v81, 1
    %v120 = vsel %vm117, %v118, %v119
    %v121 = vrot.slane %v82, 1
    %v122 = vsel %vm117, %v119, %v121
    %v123 = vrot.slane %v83, 1
    %v124 = vrot.slane %v84, 1
    %v125 = vsel %vm117, %v123, %v124
    %v126 = vrot.slane %v85, 1
    %v127 = vsel %vm117, %v124, %v126
    %s128 = scalar_lea.vmem [#allocation2], 72
    %v129 = vld [vmem:[%s128] sm:$0xff]
    %v130 = vld [vmem:[%s128 + $0x8] sm:$0xff]
    %v131 = vld [vmem:[%s128 + $0x10] sm:$0xff]
    %v132 = vld [vmem:[%s128 + $0x18] sm:$0xff]
    %v133 = vld [vmem:[%s128 + $0x20] sm:$0xff]
    %v134 = vld [vmem:[%s128 + $0x28] sm:$0xff]
    %v135 = vld [vmem:[%s128 + $0x30] sm:$0xff]
    %v136 = vld [vmem:[%s128 + $0x38] sm:$0xff]
    %v137 = vld [vmem:[%s128 + $0x40] sm:$0xff]
    %vm138 = vcmask 588800
    %v139 = vsel %vm138, %v120, 0
    %v141 = vsel %vm138, %v122, 0
    %v143 = vsel %vm138, %v125, 0
    %v145 = vsel %vm138, %v127, 0
    %147 = vmatprep.subr.mxu0 0.0
    %148 = vmatpush1.msra.mxu0 0.0
    %149 = vmatprep.subr.mxu0 0.0
    %150 = vmatpush1.msra.mxu0 0.0
    %151 = vmatprep.subr.mxu0 0.0
    %152 = vmatpush1.msra.mxu0 0.0
    %153 = vmatprep.subr.mxu0 0.0
    %154 = vmatpush1.msra.mxu0 0.0
    %155 = vmatprep.subr.mxu0 0.0
    %156 = vmatpush1.msra.mxu0 0.0
    %157 = vmatprep.subr.mxu0 0.0
    %158 = vmatpush1.msra.mxu0 0.0
    %159 = vmatprep.subr.mxu0 0.0
    %160 = vmatpush1.msra.mxu0 0.0
    %161 = vmatprep.subr.mxu0 0.0
    %162 = vmatpush1.msra.mxu0 %v137
    %163 = vmatprep.subr.mxu0 0.0
    %164 = vmatpush1.msra.mxu0 %v136
    %165 = vmatprep.subr.mxu0 0.0
    %166 = vmatpush1.msra.mxu0 %v135
    %167 = vmatprep.subr.mxu0 0.0
    %168 = vmatpush1.msra.mxu0 %v134
    %169 = vmatprep.subr.mxu0 0.0
    %170 = vmatpush1.msra.mxu0 %v133
    %171 = vmatprep.subr.mxu0 0.0
    %172 = vmatpush1.msra.mxu0 %v132
    %173 = vmatprep.subr.mxu0 0.0
    %174 = vmatpush1.msra.mxu0 %v131
    %175 = vmatprep.subr.mxu0 0.0
    %176 = vmatpush1.msra.mxu0 %v130
    %177 = vmatprep.subr.mxu0 0.0
    %178 = vmatpush1.msra.mxu0 %v129
    %179 = vmatprep.subr.mxu0 0.0
    %180 = vmatpush2.msra.mxu0 0.0
    %181 = vmatprep.subr.mxu0 0.0
    %182 = vmatpush2.msra.mxu0 0.0
    %183 = vmatprep.subr.mxu0 0.0
    %184 = vmatpush2.msra.mxu0 0.0
    %185 = vmatprep.subr.mxu0 0.0
    %186 = vmatpush2.msra.mxu0 0.0
    %187 = vmatprep.subr.mxu0 0.0
    %188 = vmatpush2.msra.mxu0 0.0
    %189 = vmatprep.subr.mxu0 0.0
    %190 = vmatpush2.msra.mxu0 0.0
    %191 = vmatprep.subr.mxu0 0.0
    %192 = vmatpush2.msra.mxu0 0.0
    %193 = vmatprep.subr.mxu0 0.0
    %194 = vmatpush2.msra.mxu0 0.0
    %195 = vmatprep.subr.mxu0 0.0
    %196 = vmatpush2.msra.mxu0 0.0
    %197 = vmatprep.subr.mxu0 0.0
    %198 = vmatpush2.msra.mxu0 0.0
    %199 = vmatprep.subr.mxu0 0.0
    %200 = vmatpush2.msra.mxu0 0.0
    %201 = vmatprep.subr.mxu0 0.0
    %202 = vmatpush2.msra.mxu0 0.0
    %203 = vmatprep.subr.mxu0 0.0
    %204 = vmatpush2.msra.mxu0 0.0
    %205 = vmatprep.subr.mxu0 0.0
    %206 = vmatpush2.msra.mxu0 0.0
    %207 = vmatprep.subr.mxu0 0.0
    %208 = vmatpush2.msra.mxu0 0.0
    %209 = vmatprep.subr.mxu0 0.0
    %210 = vmatpush2.msra.mxu0 0.0
    %211 = vmatprep.mubr.f32.mxu0 0.0
    %212 = vmatmul.mubr.f32.gmra.mxu0 %v139
    %v213 = vpop.f32.mrf.mxu0
    %v214 = vadd.f32 0.0, %v213
    %v215 = vpop.f32.mrf.mxu0
    %216 = vmatprep.mubr.f32.mxu0 0.0
    %217 = vmatmul.mubr.f32.gmra.mxu0 %v141
    %v218 = vpop.f32.mrf.mxu0
    %v219 = vadd.f32 0.0, %v218
    %v220 = vpop.f32.mrf.mxu0
    %221 = vmatprep.mubr.f32.mxu0 0.0
    %222 = vmatmul.mubr.f32.gmra.mxu0 %v143
    %v223 = vpop.f32.mrf.mxu0
    %v224 = vadd.f32 0.0, %v223
    %v225 = vpop.f32.mrf.mxu0
    %226 = vmatprep.mubr.f32.mxu0 0.0
    %227 = vmatmul.mubr.f32.gmra.mxu0 %v145
    %v228 = vpop.f32.mrf.mxu0
    %v229 = vadd.f32 0.0, %v228
    %v230 = vpop.f32.mrf.mxu0
    %231 = vdwg.mxu0
    %v232 = vsel %vm138, %v80, 0
    %v234 = vsel %vm138, %v81, 0
    %v236 = vsel %vm138, %v83, 0
    %v238 = vsel %vm138, %v84, 0
    %240 = vmatprep.subr.mxu0 0.0
    %241 = vmatpush1.msra.mxu0 0.0
    %242 = vmatprep.subr.mxu0 0.0
    %243 = vmatpush1.msra.mxu0 0.0
    %244 = vmatprep.subr.mxu0 0.0
    %245 = vmatpush1.msra.mxu0 0.0
    %246 = vmatprep.subr.mxu0 0.0
    %247 = vmatpush1.msra.mxu0 0.0
    %248 = vmatprep.subr.mxu0 0.0
    %249 = vmatpush1.msra.mxu0 0.0
    %250 = vmatprep.subr.mxu0 0.0
    %251 = vmatpush1.msra.mxu0 0.0
    %252 = vmatprep.subr.mxu0 0.0
    %253 = vmatpush1.msra.mxu0 0.0
    %254 = vmatprep.subr.mxu0 0.0
    %255 = vmatpush1.msra.mxu0 %v110
    %256 = vmatprep.subr.mxu0 0.0
    %257 = vmatpush1.msra.mxu0 %v109
    %258 = vmatprep.subr.mxu0 0.0
    %259 = vmatpush1.msra.mxu0 %v108
    %260 = vmatprep.subr.mxu0 0.0
    %261 = vmatpush1.msra.mxu0 %v107
    %262 = vmatprep.subr.mxu0 0.0
    %263 = vmatpush1.msra.mxu0 %v106
    %264 = vmatprep.subr.mxu0 0.0
    %265 = vmatpush1.msra.mxu0 %v105
    %266 = vmatprep.subr.mxu0 0.0
    %267 = vmatpush1.msra.mxu0 %v104
    %268 = vmatprep.subr.mxu0 0.0
    %269 = vmatpush1.msra.mxu0 %v103
    %270 = vmatprep.subr.mxu0 0.0
    %271 = vmatpush1.msra.mxu0 %v102
    %272 = vmatprep.subr.mxu0 0.0
    %273 = vmatpush2.msra.mxu0 0.0
    %274 = vmatprep.subr.mxu0 0.0
    %275 = vmatpush2.msra.mxu0 0.0
    %276 = vmatprep.subr.mxu0 0.0
    %277 = vmatpush2.msra.mxu0 0.0
    %278 = vmatprep.subr.mxu0 0.0
    %279 = vmatpush2.msra.mxu0 0.0
    %280 = vmatprep.subr.mxu0 0.0
    %281 = vmatpush2.msra.mxu0 0.0
    %282 = vmatprep.subr.mxu0 0.0
    %283 = vmatpush2.msra.mxu0 0.0
    %284 = vmatprep.subr.mxu0 0.0
    %285 = vmatpush2.msra.mxu0 0.0
    %286 = vmatprep.subr.mxu0 0.0
    %287 = vmatpush2.msra.mxu0 0.0
    %288 = vmatprep.subr.mxu0 0.0
    %289 = vmatpush2.msra.mxu0 0.0
    %290 = vmatprep.subr.mxu0 0.0
    %291 = vmatpush2.msra.mxu0 0.0
    %292 = vmatprep.subr.mxu0 0.0
    %293 = vmatpush2.msra.mxu0 0.0
    %294 = vmatprep.subr.mxu0 0.0
    %295 = vmatpush2.msra.mxu0 0.0
    %296 = vmatprep.subr.mxu0 0.0
    %297 = vmatpush2.msra.mxu0 0.0
    %298 = vmatprep.subr.mxu0 0.0
    %299 = vmatpush2.msra.mxu0 0.0
    %300 = vmatprep.subr.mxu0 0.0
    %301 = vmatpush2.msra.mxu0 0.0
    %302 = vmatprep.subr.mxu0 0.0
    %303 = vmatpush2.msra.mxu0 0.0
    %304 = vmatprep.mubr.f32.mxu0 0.0
    %305 = vmatmul.mubr.f32.gmra.mxu0 %v232
    %v306 = vpop.f32.mrf.mxu0
    %v307 = vadd.f32 %v214, %v306
    %v308 = vpop.f32.mrf.mxu0
    %309 = vmatprep.mubr.f32.mxu0 0.0
    %310 = vmatmul.mubr.f32.gmra.mxu0 %v234
    %v311 = vpop.f32.mrf.mxu0
    %v312 = vadd.f32 %v219, %v311
    %v313 = vpop.f32.mrf.mxu0
    %314 = vmatprep.mubr.f32.mxu0 0.0
    %315 = vmatmul.mubr.f32.gmra.mxu0 %v236
    %v316 = vpop.f32.mrf.mxu0
    %v317 = vadd.f32 %v224, %v316
    %v318 = vpop.f32.mrf.mxu0
    %319 = vmatprep.mubr.f32.mxu0 0.0
    %320 = vmatmul.mubr.f32.gmra.mxu0 %v238
    %v321 = vpop.f32.mrf.mxu0
    %v322 = vadd.f32 %v229, %v321
    %v323 = vpop.f32.mrf.mxu0
    %324 = vdwg.mxu0
    %vm325 = vcmask 1045504
    %v326 = vrot.slane %v80, 2
    %v327 = vrot.slane %v81, 2
    %v328 = vsel %vm325, %v326, %v327
    %v329 = vrot.slane %v82, 2
    %v330 = vsel %vm325, %v327, %v329
    %v331 = vrot.slane %v83, 2
    %v332 = vrot.slane %v84, 2
    %v333 = vsel %vm325, %v331, %v332
    %v334 = vrot.slane %v85, 2
    %v335 = vsel %vm325, %v332, %v334
    %s336 = scalar_lea.vmem [#allocation2], 144
    %v337 = vld [vmem:[%s336] sm:$0xff]
    %v338 = vld [vmem:[%s336 + $0x8] sm:$0xff]
    %v339 = vld [vmem:[%s336 + $0x10] sm:$0xff]
    %v340 = vld [vmem:[%s336 + $0x18] sm:$0xff]
    %v341 = vld [vmem:[%s336 + $0x20] sm:$0xff]
    %v342 = vld [vmem:[%s336 + $0x28] sm:$0xff]
    %v343 = vld [vmem:[%s336 + $0x30] sm:$0xff]
    %v344 = vld [vmem:[%s336 + $0x38] sm:$0xff]
    %v345 = vld [vmem:[%s336 + $0x40] sm:$0xff]
    %v346 = vsel %vm138, %v328, 0
    %v348 = vsel %vm138, %v330, 0
    %v350 = vsel %vm138, %v333, 0
    %v352 = vsel %vm138, %v335, 0
    %354 = vmatprep.subr.mxu0 0.0
    %355 = vmatpush1.msra.mxu0 0.0
    %356 = vmatprep.subr.mxu0 0.0
    %357 = vmatpush1.msra.mxu0 0.0
    %358 = vmatprep.subr.mxu0 0.0
    %359 = vmatpush1.msra.mxu0 0.0
    %360 = vmatprep.subr.mxu0 0.0
    %361 = vmatpush1.msra.mxu0 0.0
    %362 = vmatprep.subr.mxu0 0.0
    %363 = vmatpush1.msra.mxu0 0.0
    %364 = vmatprep.subr.mxu0 0.0
    %365 = vmatpush1.msra.mxu0 0.0
    %366 = vmatprep.subr.mxu0 0.0
    %367 = vmatpush1.msra.mxu0 0.0
    %368 = vmatprep.subr.mxu0 0.0
    %369 = vmatpush1.msra.mxu0 %v345
    %370 = vmatprep.subr.mxu0 0.0
    %371 = vmatpush1.msra.mxu0 %v344
    %372 = vmatprep.subr.mxu0 0.0
    %373 = vmatpush1.msra.mxu0 %v343
    %374 = vmatprep.subr.mxu0 0.0
    %375 = vmatpush1.msra.mxu0 %v342
    %376 = vmatprep.subr.mxu0 0.0
    %377 = vmatpush1.msra.mxu0 %v341
    %378 = vmatprep.subr.mxu0 0.0
    %379 = vmatpush1.msra.mxu0 %v340
    %380 = vmatprep.subr.mxu0 0.0
    %381 = vmatpush1.msra.mxu0 %v339
    %382 = vmatprep.subr.mxu0 0.0
    %383 = vmatpush1.msra.mxu0 %v338
    %384 = vmatprep.subr.mxu0 0.0
    %385 = vmatpush1.msra.mxu0 %v337
    %386 = vmatprep.subr.mxu0 0.0
    %387 = vmatpush2.msra.mxu0 0.0
    %388 = vmatprep.subr.mxu0 0.0
    %389 = vmatpush2.msra.mxu0 0.0
    %390 = vmatprep.subr.mxu0 0.0
    %391 = vmatpush2.msra.mxu0 0.0
    %392 = vmatprep.subr.mxu0 0.0
    %393 = vmatpush2.msra.mxu0 0.0
    %394 = vmatprep.subr.mxu0 0.0
    %395 = vmatpush2.msra.mxu0 0.0
    %396 = vmatprep.subr.mxu0 0.0
    %397 = vmatpush2.msra.mxu0 0.0
    %398 = vmatprep.subr.mxu0 0.0
    %399 = vmatpush2.msra.mxu0 0.0
    %400 = vmatprep.subr.mxu0 0.0
    %401 = vmatpush2.msra.mxu0 0.0
    %402 = vmatprep.subr.mxu0 0.0
    %403 = vmatpush2.msra.mxu0 0.0
    %404 = vmatprep.subr.mxu0 0.0
    %405 = vmatpush2.msra.mxu0 0.0
    %406 = vmatprep.subr.mxu0 0.0
    %407 = vmatpush2.msra.mxu0 0.0
    %408 = vmatprep.subr.mxu0 0.0
    %409 = vmatpush2.msra.mxu0 0.0
    %410 = vmatprep.subr.mxu0 0.0
    %411 = vmatpush2.msra.mxu0 0.0
    %412 = vmatprep.subr.mxu0 0.0
    %413 = vmatpush2.msra.mxu0 0.0
    %414 = vmatprep.subr.mxu0 0.0
    %415 = vmatpush2.msra.mxu0 0.0
    %416 = vmatprep.subr.mxu0 0.0
    %417 = vmatpush2.msra.mxu0 0.0
    %418 = vmatprep.mubr.f32.mxu0 0.0
    %419 = vmatmul.mubr.f32.gmra.mxu0 %v346
    %v420 = vpop.f32.mrf.mxu0
    %v421 = vadd.f32 0.0, %v420
    %v422 = vpop.f32.mrf.mxu0
    %423 = vmatprep.mubr.f32.mxu0 0.0
    %424 = vmatmul.mubr.f32.gmra.mxu0 %v348
    %v425 = vpop.f32.mrf.mxu0
    %v426 = vadd.f32 0.0, %v425
    %v427 = vpop.f32.mrf.mxu0
    %428 = vmatprep.mubr.f32.mxu0 0.0
    %429 = vmatmul.mubr.f32.gmra.mxu0 %v350
    %v430 = vpop.f32.mrf.mxu0
    %v431 = vadd.f32 0.0, %v430
    %v432 = vpop.f32.mrf.mxu0
    %433 = vmatprep.mubr.f32.mxu0 0.0
    %434 = vmatmul.mubr.f32.gmra.mxu0 %v352
    %v435 = vpop.f32.mrf.mxu0
    %v436 = vadd.f32 0.0, %v435
    %v437 = vpop.f32.mrf.mxu0
    %438 = vdwg.mxu0
    %v439 = vadd.f32 %v307, %v421
    %v440 = vadd.f32 %v312, %v426
    %v441 = vadd.f32 %v317, %v431
    %v442 = vadd.f32 %v322, %v436
    %v443 = vld [vmem:[%s5] sm:$0x1]
    %v444 = vld [vmem:[%s6] sm:$0x1]
    %v445 = vadd.f32 %v439, %v440
    %v446 = vadd.f32 %v445, %v441
    %v447 = vadd.f32 %v446, %v442
    %v448 = vrot.slane %v447, 4
    %v449 = vadd.f32 %v447, %v448
    %v450 = vrot.slane %v449, 2
    %v451 = vadd.f32 %v449, %v450
    %v452 = vrot.slane %v451, 1
    %v453 = vadd.f32 %v451, %v452
    %v454 = vmul.f32 %v439, %v439
    %v455 = vmul.f32 %v440, %v440
    %v456 = vmul.f32 %v441, %v441
    %v457 = vmul.f32 %v442, %v442
    %v458 = vadd.f32 %v454, %v455
    %v459 = vadd.f32 %v458, %v456
    %v460 = vadd.f32 %v459, %v457
    %v461 = vrot.slane %v460, 4
    %v462 = vadd.f32 %v460, %v461
    %v463 = vrot.slane %v462, 2
    %v464 = vadd.f32 %v462, %v463
    %v465 = vrot.slane %v464, 1
    %v466 = vadd.f32 %v464, %v465
    %467 = vmatprep.subr.mxu0 0.0
    %468 = vmatpush1.msra.mxu0 %v101
    %469 = vmatprep.subr.mxu0 0.0
    %470 = vmatpush1.msra.mxu0 %v100
    %471 = vmatprep.subr.mxu0 0.0
    %472 = vmatpush1.msra.mxu0 %v99
    %473 = vmatprep.subr.mxu0 0.0
    %474 = vmatpush1.msra.mxu0 %v98
    %475 = vmatprep.subr.mxu0 0.0
    %476 = vmatpush1.msra.mxu0 %v97
    %477 = vmatprep.subr.mxu0 0.0
    %478 = vmatpush1.msra.mxu0 %v96
    %479 = vmatprep.subr.mxu0 0.0
    %480 = vmatpush1.msra.mxu0 %v95
    %481 = vmatprep.subr.mxu0 0.0
    %482 = vmatpush1.msra.mxu0 %v94
    %483 = vmatprep.subr.mxu0 0.0
    %484 = vmatpush1.msra.mxu0 %v93
    %485 = vmatprep.subr.mxu0 0.0
    %486 = vmatpush1.msra.mxu0 %v92
    %487 = vmatprep.subr.mxu0 0.0
    %488 = vmatpush1.msra.mxu0 %v91
    %489 = vmatprep.subr.mxu0 0.0
    %490 = vmatpush1.msra.mxu0 %v90
    %491 = vmatprep.subr.mxu0 0.0
    %492 = vmatpush1.msra.mxu0 %v89
    %493 = vmatprep.subr.mxu0 0.0
    %494 = vmatpush1.msra.mxu0 %v88
    %495 = vmatprep.subr.mxu0 0.0
    %496 = vmatpush1.msra.mxu0 %v87
    %497 = vmatprep.subr.mxu0 0.0
    %498 = vmatpush1.msra.mxu0 %v86
    %499 = vmatprep.subr.mxu0 0.0
    %500 = vmatpush2.msra.mxu0 0.0
    %501 = vmatprep.subr.mxu0 0.0
    %502 = vmatpush2.msra.mxu0 0.0
    %503 = vmatprep.subr.mxu0 0.0
    %504 = vmatpush2.msra.mxu0 0.0
    %505 = vmatprep.subr.mxu0 0.0
    %506 = vmatpush2.msra.mxu0 0.0
    %507 = vmatprep.subr.mxu0 0.0
    %508 = vmatpush2.msra.mxu0 0.0
    %509 = vmatprep.subr.mxu0 0.0
    %510 = vmatpush2.msra.mxu0 0.0
    %511 = vmatprep.subr.mxu0 0.0
    %512 = vmatpush2.msra.mxu0 0.0
    %513 = vmatprep.subr.mxu0 0.0
    %514 = vmatpush2.msra.mxu0 0.0
    %515 = vmatprep.subr.mxu0 0.0
    %516 = vmatpush2.msra.mxu0 0.0
    %517 = vmatprep.subr.mxu0 0.0
    %518 = vmatpush2.msra.mxu0 0.0
    %519 = vmatprep.subr.mxu0 0.0
    %520 = vmatpush2.msra.mxu0 0.0
    %521 = vmatprep.subr.mxu0 0.0
    %522 = vmatpush2.msra.mxu0 0.0
    %523 = vmatprep.subr.mxu0 0.0
    %524 = vmatpush2.msra.mxu0 0.0
    %525 = vmatprep.subr.mxu0 0.0
    %526 = vmatpush2.msra.mxu0 0.0
    %527 = vmatprep.subr.mxu0 0.0
    %528 = vmatpush2.msra.mxu0 0.0
    %529 = vmatprep.subr.mxu0 0.0
    %530 = vmatpush2.msra.mxu0 0.0
    %531 = vmatprep.mubr.f32.mxu0 0.0
    %532 = vmatmul.mubr.f32.gmra.mxu0 %v453
    %v533 = vpop.f32.mrf.mxu0
    %v534 = vadd.f32 0.0, %v533
    %v535 = vpop.f32.mrf.mxu0
    %536 = vdwg.mxu0
    %537 = vmatprep.subr.mxu0 0.0
    %538 = vmatpush1.msra.mxu0 %v101
    %539 = vmatprep.subr.mxu0 0.0
    %540 = vmatpush1.msra.mxu0 %v100
    %541 = vmatprep.subr.mxu0 0.0
    %542 = vmatpush1.msra.mxu0 %v99
    %543 = vmatprep.subr.mxu0 0.0
    %544 = vmatpush1.msra.mxu0 %v98
    %545 = vmatprep.subr.mxu0 0.0
    %546 = vmatpush1.msra.mxu0 %v97
    %547 = vmatprep.subr.mxu0 0.0
    %548 = vmatpush1.msra.mxu0 %v96
    %549 = vmatprep.subr.mxu0 0.0
    %550 = vmatpush1.msra.mxu0 %v95
    %551 = vmatprep.subr.mxu0 0.0
    %552 = vmatpush1.msra.mxu0 %v94
    %553 = vmatprep.subr.mxu0 0.0
    %554 = vmatpush1.msra.mxu0 %v93
    %555 = vmatprep.subr.mxu0 0.0
    %556 = vmatpush1.msra.mxu0 %v92
    %557 = vmatprep.subr.mxu0 0.0
    %558 = vmatpush1.msra.mxu0 %v91
    %559 = vmatprep.subr.mxu0 0.0
    %560 = vmatpush1.msra.mxu0 %v90
    %561 = vmatprep.subr.mxu0 0.0
    %562 = vmatpush1.msra.mxu0 %v89
    %563 = vmatprep.subr.mxu0 0.0
    %564 = vmatpush1.msra.mxu0 %v88
    %565 = vmatprep.subr.mxu0 0.0
    %566 = vmatpush1.msra.mxu0 %v87
    %567 = vmatprep.subr.mxu0 0.0
    %568 = vmatpush1.msra.mxu0 %v86
    %569 = vmatprep.subr.mxu0 0.0
    %570 = vmatpush2.msra.mxu0 0.0
    %571 = vmatprep.subr.mxu0 0.0
    %572 = vmatpush2.msra.mxu0 0.0
    %573 = vmatprep.subr.mxu0 0.0
    %574 = vmatpush2.msra.mxu0 0.0
    %575 = vmatprep.subr.mxu0 0.0
    %576 = vmatpush2.msra.mxu0 0.0
    %577 = vmatprep.subr.mxu0 0.0
    %578 = vmatpush2.msra.mxu0 0.0
    %579 = vmatprep.subr.mxu0 0.0
    %580 = vmatpush2.msra.mxu0 0.0
    %581 = vmatprep.subr.mxu0 0.0
    %582 = vmatpush2.msra.mxu0 0.0
    %583 = vmatprep.subr.mxu0 0.0
    %584 = vmatpush2.msra.mxu0 0.0
    %585 = vmatprep.subr.mxu0 0.0
    %586 = vmatpush2.msra.mxu0 0.0
    %587 = vmatprep.subr.mxu0 0.0
    %588 = vmatpush2.msra.mxu0 0.0
    %589 = vmatprep.subr.mxu0 0.0
    %590 = vmatpush2.msra.mxu0 0.0
    %591 = vmatprep.subr.mxu0 0.0
    %592 = vmatpush2.msra.mxu0 0.0
    %593 = vmatprep.subr.mxu0 0.0
    %594 = vmatpush2.msra.mxu0 0.0
    %595 = vmatprep.subr.mxu0 0.0
    %596 = vmatpush2.msra.mxu0 0.0
    %597 = vmatprep.subr.mxu0 0.0
    %598 = vmatpush2.msra.mxu0 0.0
    %599 = vmatprep.subr.mxu0 0.0
    %600 = vmatpush2.msra.mxu0 0.0
    %601 = vmatprep.mubr.f32.mxu0 0.0
    %602 = vmatmul.mubr.f32.gmra.mxu0 %v466
    %v603 = vpop.f32.mrf.mxu0
    %v604 = vadd.f32 0.0, %v603
    %v605 = vpop.f32.mrf.mxu0
    %606 = vdwg.mxu0
    %v607 = vmul.f32 %v534, 0.001953125
    %v608 = vmul.f32 %v604, 0.001953125
    %v609 = vmul.f32 %v607, %v607
    %v610 = vsub.f32 %v608, %v609
    %v611 = vmax.f32 %v610, 0.0
    %v612 = vadd.f32 %v611, 1e-05
    %v613 = vrsqrt.pop %v612
    %v614 = vlaneseq
    %v615 = vshrl.u32 %v614, 7
    %v616 = vsub.s32 0, %v615
    %v617 = vrot.slane %v607, %v616
    %v618 = vsub.f32 %v439, %v617
    %v619 = vsub.f32 %v440, %v617
    %v620 = vsub.f32 %v441, %v617
    %v621 = vsub.f32 %v442, %v617
    %v622 = vmul.f32 %v613, %v443
    %v623 = vlaneseq
    %v624 = vshrl.u32 %v623, 7
    %v625 = vsub.s32 0, %v624
    %v626 = vrot.slane %v622, %v625
    %v627 = vmul.f32 %v618, %v626
    %v628 = vmul.f32 %v619, %v626
    %v629 = vmul.f32 %v620, %v626
    %v630 = vmul.f32 %v621, %v626
    %v632 = vlaneseq
    %v633 = vshrl.u32 %v632, 7
    %v634 = vsub.s32 0, %v633
    %v635 = vrot.slane %v444, %v634
    %v637 = vadd.f32 %v627, %v635
    %v638 = vadd.f32 %v628, %v635
    %v639 = vadd.f32 %v629, %v635
    %v640 = vadd.f32 %v630, %v635
    %v641 = vmax.f32 %v637, 0.0
    %v642 = vmax.f32 %v638, 0.0
    %v643 = vmax.f32 %v639, 0.0
    %v644 = vmax.f32 %v640, 0.0
    %649 = vrot.lane.b32.xlu0 %v641, 8
    %v650 = vpop.permute.xlu0 %649
    %651 = vrot.lane.b32.xlu0 %v642, 8
    %v652 = vpop.permute.xlu0 %651
    %653 = vrot.lane.b32.xlu0 %v643, 8
    %v654 = vpop.permute.xlu0 %653
    %655 = vrot.lane.b32.xlu0 %v644, 8
    %v656 = vpop.permute.xlu0 %655
    %vm661 = vcmask 64512
    %v662 = vsel %vm661, 0.0, %v650
    %v663 = vsel %vm661, 0.0, %v652
    %v664 = vsel %vm661, 0.0, %v654
    %v665 = vsel %vm661, 0.0, %v656
    %v666 = vsel %vm661, %v650, 0.0
    %v667 = vsel %vm661, %v652, 0.0
    %v668 = vsel %vm661, %v654, 0.0
    %v669 = vsel %vm661, %v656, 0.0
    %vm678 = vcmask 1040384
    %v679 = vrot.slane %v662, 7
    %v680 = vrot.slane %v666, 7
    %v681 = vrot.slane %v663, 7
    %v682 = vsel %vm678, %v679, %v681
    %v683 = vrot.slane %v667, 7
    %v684 = vsel %vm678, %v680, %v683
    %v685 = vrot.slane %v664, 7
    %v686 = vrot.slane %v668, 7
    %v687 = vrot.slane %v665, 7
    %v688 = vsel %vm678, %v685, %v687
    %v689 = vrot.slane %v669, 7
    %v690 = vsel %vm678, %v686, %v689
    %v701 = vsel %vm678, 0.0, %v679
    %v702 = vsel %vm678, 0.0, %v680
    %v703 = vsel %vm678, 0.0, %v685
    %v704 = vsel %vm678, 0.0, %v686
    %v705 = vsel %vm678, %v681, 0.0
    %v706 = vsel %vm678, %v683, 0.0
    %v707 = vsel %vm678, %v687, 0.0
    %v708 = vsel %vm678, %v689, 0.0
    %v709 = vld [vmem:[#allocation5] sm:$0xff]
    %v710 = vld [vmem:[#allocation5 + $0x8] sm:$0xff]
    %v711 = vld [vmem:[#allocation5 + $0x10] sm:$0xff]
    %v712 = vld [vmem:[#allocation5 + $0x18] sm:$0xff]
    %v713 = vld [vmem:[#allocation5 + $0x20] sm:$0xff]
    %v714 = vld [vmem:[#allocation5 + $0x28] sm:$0xff]
    %v715 = vld [vmem:[#allocation5 + $0x30] sm:$0xff]
    %v716 = vld [vmem:[#allocation5 + $0x38] sm:$0xff]
    %v717 = vld [vmem:[#allocation5 + $0x40] sm:$0xff]
    %v718 = vld [vmem:[#allocation5 + $0x48] sm:$0xff]
    %v719 = vld [vmem:[#allocation5 + $0x50] sm:$0xff]
    %v720 = vld [vmem:[#allocation5 + $0x58] sm:$0xff]
    %v721 = vld [vmem:[#allocation5 + $0x60] sm:$0xff]
    %v722 = vld [vmem:[#allocation5 + $0x68] sm:$0xff]
    %v723 = vld [vmem:[#allocation5 + $0x70] sm:$0xff]
    %v724 = vld [vmem:[#allocation5 + $0x78] sm:$0xff]
    %v725 = vld [vmem:[#allocation5 + $0x80] sm:$0xff]
    %v726 = vld [vmem:[#allocation5 + $0x88] sm:$0xff]
    %v735 = vrot.slane %v701, 1
    %v736 = vrot.slane %v682, 1
    %v737 = vsel %vm117, %v735, %v736
    %v738 = vrot.slane %v702, 1
    %v739 = vrot.slane %v684, 1
    %v740 = vsel %vm117, %v738, %v739
    %v741 = vrot.slane %v705, 1
    %v742 = vsel %vm117, %v736, %v741
    %v743 = vrot.slane %v706, 1
    %v744 = vsel %vm117, %v739, %v743
    %v745 = vrot.slane %v703, 1
    %v746 = vrot.slane %v688, 1
    %v747 = vsel %vm117, %v745, %v746
    %v748 = vrot.slane %v704, 1
    %v749 = vrot.slane %v690, 1
    %v750 = vsel %vm117, %v748, %v749
    %v751 = vrot.slane %v707, 1
    %v752 = vsel %vm117, %v746, %v751
    %v753 = vrot.slane %v708, 1
    %v754 = vsel %vm117, %v749, %v753
    %s759 = scalar_lea.vmem [#allocation5], 144
    %v760 = vld [vmem:[%s759] sm:$0xff]
    %v761 = vld [vmem:[%s759 + $0x8] sm:$0xff]
    %v762 = vld [vmem:[%s759 + $0x10] sm:$0xff]
    %v763 = vld [vmem:[%s759 + $0x18] sm:$0xff]
    %v764 = vld [vmem:[%s759 + $0x20] sm:$0xff]
    %v765 = vld [vmem:[%s759 + $0x28] sm:$0xff]
    %v766 = vld [vmem:[%s759 + $0x30] sm:$0xff]
    %v767 = vld [vmem:[%s759 + $0x38] sm:$0xff]
    %v768 = vld [vmem:[%s759 + $0x40] sm:$0xff]
    %v769 = vld [vmem:[%s759 + $0x48] sm:$0xff]
    %v770 = vld [vmem:[%s759 + $0x50] sm:$0xff]
    %v771 = vld [vmem:[%s759 + $0x58] sm:$0xff]
    %v772 = vld [vmem:[%s759 + $0x60] sm:$0xff]
    %v773 = vld [vmem:[%s759 + $0x68] sm:$0xff]
    %v774 = vld [vmem:[%s759 + $0x70] sm:$0xff]
    %v775 = vld [vmem:[%s759 + $0x78] sm:$0xff]
    %v776 = vld [vmem:[%s759 + $0x80] sm:$0xff]
    %v777 = vld [vmem:[%s759 + $0x88] sm:$0xff]
    %vm778 = vcmask 130048
    %v779 = vsel %vm778, %v740, 0
    %v781 = vsel %vm778, %v744, 0
    %v783 = vsel %vm778, %v750, 0
    %v785 = vsel %vm778, %v754, 0
    %787 = vmatprep.subr.mxu0 0.0
    %788 = vmatpush1.msra.mxu0 %v775
    %789 = vmatprep.subr.mxu0 0.0
    %790 = vmatpush1.msra.mxu0 %v774
    %791 = vmatprep.subr.mxu0 0.0
    %792 = vmatpush1.msra.mxu0 %v773
    %793 = vmatprep.subr.mxu0 0.0
    %794 = vmatpush1.msra.mxu0 %v772
    %795 = vmatprep.subr.mxu0 0.0
    %796 = vmatpush1.msra.mxu0 %v771
    %797 = vmatprep.subr.mxu0 0.0
    %798 = vmatpush1.msra.mxu0 %v770
    %799 = vmatprep.subr.mxu0 0.0
    %800 = vmatpush1.msra.mxu0 %v769
    %801 = vmatprep.subr.mxu0 0.0
    %802 = vmatpush1.msra.mxu0 %v768
    %803 = vmatprep.subr.mxu0 0.0
    %804 = vmatpush1.msra.mxu0 %v767
    %805 = vmatprep.subr.mxu0 0.0
    %806 = vmatpush1.msra.mxu0 %v766
    %807 = vmatprep.subr.mxu0 0.0
    %808 = vmatpush1.msra.mxu0 %v765
    %809 = vmatprep.subr.mxu0 0.0
    %810 = vmatpush1.msra.mxu0 %v764
    %811 = vmatprep.subr.mxu0 0.0
    %812 = vmatpush1.msra.mxu0 %v763
    %813 = vmatprep.subr.mxu0 0.0
    %814 = vmatpush1.msra.mxu0 %v762
    %815 = vmatprep.subr.mxu0 0.0
    %816 = vmatpush1.msra.mxu0 %v761
    %817 = vmatprep.subr.mxu0 0.0
    %818 = vmatpush1.msra.mxu0 %v760
    %819 = vmatprep.subr.mxu0 0.0
    %820 = vmatpush2.msra.mxu0 0.0
    %821 = vmatprep.subr.mxu0 0.0
    %822 = vmatpush2.msra.mxu0 0.0
    %823 = vmatprep.subr.mxu0 0.0
    %824 = vmatpush2.msra.mxu0 0.0
    %825 = vmatprep.subr.mxu0 0.0
    %826 = vmatpush2.msra.mxu0 0.0
    %827 = vmatprep.subr.mxu0 0.0
    %828 = vmatpush2.msra.mxu0 0.0
    %829 = vmatprep.subr.mxu0 0.0
    %830 = vmatpush2.msra.mxu0 0.0
    %831 = vmatprep.subr.mxu0 0.0
    %832 = vmatpush2.msra.mxu0 0.0
    %833 = vmatprep.subr.mxu0 0.0
    %834 = vmatpush2.msra.mxu0 0.0
    %835 = vmatprep.subr.mxu0 0.0
    %836 = vmatpush2.msra.mxu0 0.0
    %837 = vmatprep.subr.mxu0 0.0
    %838 = vmatpush2.msra.mxu0 0.0
    %839 = vmatprep.subr.mxu0 0.0
    %840 = vmatpush2.msra.mxu0 0.0
    %841 = vmatprep.subr.mxu0 0.0
    %842 = vmatpush2.msra.mxu0 0.0
    %843 = vmatprep.subr.mxu0 0.0
    %844 = vmatpush2.msra.mxu0 0.0
    %845 = vmatprep.subr.mxu0 0.0
    %846 = vmatpush2.msra.mxu0 0.0
    %847 = vmatprep.subr.mxu0 0.0
    %848 = vmatpush2.msra.mxu0 %v777
    %849 = vmatprep.subr.mxu0 0.0
    %850 = vmatpush2.msra.mxu0 %v776
    %851 = vmatprep.mubr.f32.mxu0 %v779
    %852 = vmatmul.mubr.f32.gmra.mxu0 %v737
    %v853 = vpop.f32.mrf.mxu0
    %v854 = vadd.f32 0.0, %v853
    %v855 = vpop.f32.mrf.mxu0
    %856 = vmatprep.mubr.f32.mxu0 %v781
    %857 = vmatmul.mubr.f32.gmra.mxu0 %v742
    %v858 = vpop.f32.mrf.mxu0
    %v859 = vadd.f32 0.0, %v858
    %v860 = vpop.f32.mrf.mxu0
    %861 = vmatprep.mubr.f32.mxu0 %v783
    %862 = vmatmul.mubr.f32.gmra.mxu0 %v747
    %v863 = vpop.f32.mrf.mxu0
    %v864 = vadd.f32 0.0, %v863
    %v865 = vpop.f32.mrf.mxu0
    %866 = vmatprep.mubr.f32.mxu0 %v785
    %867 = vmatmul.mubr.f32.gmra.mxu0 %v752
    %v868 = vpop.f32.mrf.mxu0
    %v869 = vadd.f32 0.0, %v868
    %v870 = vpop.f32.mrf.mxu0
    %871 = vdwg.mxu0
    %v872 = vsel %vm778, %v702, 0
    %v874 = vsel %vm778, %v684, 0
    %v876 = vsel %vm778, %v704, 0
    %v878 = vsel %vm778, %v690, 0
    %880 = vmatprep.subr.mxu0 0.0
    %881 = vmatpush1.msra.mxu0 %v724
    %882 = vmatprep.subr.mxu0 0.0
    %883 = vmatpush1.msra.mxu0 %v723
    %884 = vmatprep.subr.mxu0 0.0
    %885 = vmatpush1.msra.mxu0 %v722
    %886 = vmatprep.subr.mxu0 0.0
    %887 = vmatpush1.msra.mxu0 %v721
    %888 = vmatprep.subr.mxu0 0.0
    %889 = vmatpush1.msra.mxu0 %v720
    %890 = vmatprep.subr.mxu0 0.0
    %891 = vmatpush1.msra.mxu0 %v719
    %892 = vmatprep.subr.mxu0 0.0
    %893 = vmatpush1.msra.mxu0 %v718
    %894 = vmatprep.subr.mxu0 0.0
    %895 = vmatpush1.msra.mxu0 %v717
    %896 = vmatprep.subr.mxu0 0.0
    %897 = vmatpush1.msra.mxu0 %v716
    %898 = vmatprep.subr.mxu0 0.0
    %899 = vmatpush1.msra.mxu0 %v715
    %900 = vmatprep.subr.mxu0 0.0
    %901 = vmatpush1.msra.mxu0 %v714
    %902 = vmatprep.subr.mxu0 0.0
    %903 = vmatpush1.msra.mxu0 %v713
    %904 = vmatprep.subr.mxu0 0.0
    %905 = vmatpush1.msra.mxu0 %v712
    %906 = vmatprep.subr.mxu0 0.0
    %907 = vmatpush1.msra.mxu0 %v711
    %908 = vmatprep.subr.mxu0 0.0
    %909 = vmatpush1.msra.mxu0 %v710
    %910 = vmatprep.subr.mxu0 0.0
    %911 = vmatpush1.msra.mxu0 %v709
    %912 = vmatprep.subr.mxu0 0.0
    %913 = vmatpush2.msra.mxu0 0.0
    %914 = vmatprep.subr.mxu0 0.0
    %915 = vmatpush2.msra.mxu0 0.0
    %916 = vmatprep.subr.mxu0 0.0
    %917 = vmatpush2.msra.mxu0 0.0
    %918 = vmatprep.subr.mxu0 0.0
    %919 = vmatpush2.msra.mxu0 0.0
    %920 = vmatprep.subr.mxu0 0.0
    %921 = vmatpush2.msra.mxu0 0.0
    %922 = vmatprep.subr.mxu0 0.0
    %923 = vmatpush2.msra.mxu0 0.0
    %924 = vmatprep.subr.mxu0 0.0
    %925 = vmatpush2.msra.mxu0 0.0
    %926 = vmatprep.subr.mxu0 0.0
    %927 = vmatpush2.msra.mxu0 0.0
    %928 = vmatprep.subr.mxu0 0.0
    %929 = vmatpush2.msra.mxu0 0.0
    %930 = vmatprep.subr.mxu0 0.0
    %931 = vmatpush2.msra.mxu0 0.0
    %932 = vmatprep.subr.mxu0 0.0
    %933 = vmatpush2.msra.mxu0 0.0
    %934 = vmatprep.subr.mxu0 0.0
    %935 = vmatpush2.msra.mxu0 0.0
    %936 = vmatprep.subr.mxu0 0.0
    %937 = vmatpush2.msra.mxu0 0.0
    %938 = vmatprep.subr.mxu0 0.0
    %939 = vmatpush2.msra.mxu0 0.0
    %940 = vmatprep.subr.mxu0 0.0
    %941 = vmatpush2.msra.mxu0 %v726
    %942 = vmatprep.subr.mxu0 0.0
    %943 = vmatpush2.msra.mxu0 %v725
    %944 = vmatprep.mubr.f32.mxu0 %v872
    %945 = vmatmul.mubr.f32.gmra.mxu0 %v701
    %v946 = vpop.f32.mrf.mxu0
    %v947 = vadd.f32 %v854, %v946
    %v948 = vpop.f32.mrf.mxu0
    %949 = vmatprep.mubr.f32.mxu0 %v874
    %950 = vmatmul.mubr.f32.gmra.mxu0 %v682
    %v951 = vpop.f32.mrf.mxu0
    %v952 = vadd.f32 %v859, %v951
    %v953 = vpop.f32.mrf.mxu0
    %954 = vmatprep.mubr.f32.mxu0 %v876
    %955 = vmatmul.mubr.f32.gmra.mxu0 %v703
    %v956 = vpop.f32.mrf.mxu0
    %v957 = vadd.f32 %v864, %v956
    %v958 = vpop.f32.mrf.mxu0
    %959 = vmatprep.mubr.f32.mxu0 %v878
    %960 = vmatmul.mubr.f32.gmra.mxu0 %v688
    %v961 = vpop.f32.mrf.mxu0
    %v962 = vadd.f32 %v869, %v961
    %v963 = vpop.f32.mrf.mxu0
    %964 = vdwg.mxu0
    %v965 = vrot.slane %v701, 2
    %v966 = vrot.slane %v682, 2
    %v967 = vsel %vm325, %v965, %v966
    %v968 = vrot.slane %v702, 2
    %v969 = vrot.slane %v684, 2
    %v970 = vsel %vm325, %v968, %v969
    %v971 = vrot.slane %v705, 2
    %v972 = vsel %vm325, %v966, %v971
    %v973 = vrot.slane %v706, 2
    %v974 = vsel %vm325, %v969, %v973
    %v975 = vrot.slane %v703, 2
    %v976 = vrot.slane %v688, 2
    %v977 = vsel %vm325, %v975, %v976
    %v978 = vrot.slane %v704, 2
    %v979 = vrot.slane %v690, 2
    %v980 = vsel %vm325, %v978, %v979
    %v981 = vrot.slane %v707, 2
    %v982 = vsel %vm325, %v976, %v981
    %v983 = vrot.slane %v708, 2
    %v984 = vsel %vm325, %v979, %v983
    %s989 = scalar_lea.vmem [#allocation5], 288
    %v990 = vld [vmem:[%s989] sm:$0xff]
    %v991 = vld [vmem:[%s989 + $0x8] sm:$0xff]
    %v992 = vld [vmem:[%s989 + $0x10] sm:$0xff]
    %v993 = vld [vmem:[%s989 + $0x18] sm:$0xff]
    %v994 = vld [vmem:[%s989 + $0x20] sm:$0xff]
    %v995 = vld [vmem:[%s989 + $0x28] sm:$0xff]
    %v996 = vld [vmem:[%s989 + $0x30] sm:$0xff]
    %v997 = vld [vmem:[%s989 + $0x38] sm:$0xff]
    %v998 = vld [vmem:[%s989 + $0x40] sm:$0xff]
    %v999 = vld [vmem:[%s989 + $0x48] sm:$0xff]
    %v1000 = vld [vmem:[%s989 + $0x50] sm:$0xff]
    %v1001 = vld [vmem:[%s989 + $0x58] sm:$0xff]
    %v1002 = vld [vmem:[%s989 + $0x60] sm:$0xff]
    %v1003 = vld [vmem:[%s989 + $0x68] sm:$0xff]
    %v1004 = vld [vmem:[%s989 + $0x70] sm:$0xff]
    %v1005 = vld [vmem:[%s989 + $0x78] sm:$0xff]
    %v1006 = vld [vmem:[%s989 + $0x80] sm:$0xff]
    %v1007 = vld [vmem:[%s989 + $0x88] sm:$0xff]
    %v1008 = vsel %vm778, %v970, 0
    %v1010 = vsel %vm778, %v974, 0
    %v1012 = vsel %vm778, %v980, 0
    %v1014 = vsel %vm778, %v984, 0
    %1016 = vmatprep.subr.mxu0 0.0
    %1017 = vmatpush1.msra.mxu0 %v1005
    %1018 = vmatprep.subr.mxu0 0.0
    %1019 = vmatpush1.msra.mxu0 %v1004
    %1020 = vmatprep.subr.mxu0 0.0
    %1021 = vmatpush1.msra.mxu0 %v1003
    %1022 = vmatprep.subr.mxu0 0.0
    %1023 = vmatpush1.msra.mxu0 %v1002
    %1024 = vmatprep.subr.mxu0 0.0
    %1025 = vmatpush1.msra.mxu0 %v1001
    %1026 = vmatprep.subr.mxu0 0.0
    %1027 = vmatpush1.msra.mxu0 %v1000
    %1028 = vmatprep.subr.mxu0 0.0
    %1029 = vmatpush1.msra.mxu0 %v999
    %1030 = vmatprep.subr.mxu0 0.0
    %1031 = vmatpush1.msra.mxu0 %v998
    %1032 = vmatprep.subr.mxu0 0.0
    %1033 = vmatpush1.msra.mxu0 %v997
    %1034 = vmatprep.subr.mxu0 0.0
    %1035 = vmatpush1.msra.mxu0 %v996
    %1036 = vmatprep.subr.mxu0 0.0
    %1037 = vmatpush1.msra.mxu0 %v995
    %1038 = vmatprep.subr.mxu0 0.0
    %1039 = vmatpush1.msra.mxu0 %v994
    %1040 = vmatprep.subr.mxu0 0.0
    %1041 = vmatpush1.msra.mxu0 %v993
    %1042 = vmatprep.subr.mxu0 0.0
    %1043 = vmatpush1.msra.mxu0 %v992
    %1044 = vmatprep.subr.mxu0 0.0
    %1045 = vmatpush1.msra.mxu0 %v991
    %1046 = vmatprep.subr.mxu0 0.0
    %1047 = vmatpush1.msra.mxu0 %v990
    %1048 = vmatprep.subr.mxu0 0.0
    %1049 = vmatpush2.msra.mxu0 0.0
    %1050 = vmatprep.subr.mxu0 0.0
    %1051 = vmatpush2.msra.mxu0 0.0
    %1052 = vmatprep.subr.mxu0 0.0
    %1053 = vmatpush2.msra.mxu0 0.0
    %1054 = vmatprep.subr.mxu0 0.0
    %1055 = vmatpush2.msra.mxu0 0.0
    %1056 = vmatprep.subr.mxu0 0.0
    %1057 = vmatpush2.msra.mxu0 0.0
    %1058 = vmatprep.subr.mxu0 0.0
    %1059 = vmatpush2.msra.mxu0 0.0
    %1060 = vmatprep.subr.mxu0 0.0
    %1061 = vmatpush2.msra.mxu0 0.0
    %1062 = vmatprep.subr.mxu0 0.0
    %1063 = vmatpush2.msra.mxu0 0.0
    %1064 = vmatprep.subr.mxu0 0.0
    %1065 = vmatpush2.msra.mxu0 0.0
    %1066 = vmatprep.subr.mxu0 0.0
    %1067 = vmatpush2.msra.mxu0 0.0
    %1068 = vmatprep.subr.mxu0 0.0
    %1069 = vmatpush2.msra.mxu0 0.0
    %1070 = vmatprep.subr.mxu0 0.0
    %1071 = vmatpush2.msra.mxu0 0.0
    %1072 = vmatprep.subr.mxu0 0.0
    %1073 = vmatpush2.msra.mxu0 0.0
    %1074 = vmatprep.subr.mxu0 0.0
    %1075 = vmatpush2.msra.mxu0 0.0
    %1076 = vmatprep.subr.mxu0 0.0
    %1077 = vmatpush2.msra.mxu0 %v1007
    %1078 = vmatprep.subr.mxu0 0.0
    %1079 = vmatpush2.msra.mxu0 %v1006
    %1080 = vmatprep.mubr.f32.mxu0 %v1008
    %1081 = vmatmul.mubr.f32.gmra.mxu0 %v967
    %v1082 = vpop.f32.mrf.mxu0
    %v1083 = vadd.f32 0.0, %v1082
    %v1084 = vpop.f32.mrf.mxu0
    %1085 = vmatprep.mubr.f32.mxu0 %v1010
    %1086 = vmatmul.mubr.f32.gmra.mxu0 %v972
    %v1087 = vpop.f32.mrf.mxu0
    %v1088 = vadd.f32 0.0, %v1087
    %v1089 = vpop.f32.mrf.mxu0
    %1090 = vmatprep.mubr.f32.mxu0 %v1012
    %1091 = vmatmul.mubr.f32.gmra.mxu0 %v977
    %v1092 = vpop.f32.mrf.mxu0
    %v1093 = vadd.f32 0.0, %v1092
    %v1094 = vpop.f32.mrf.mxu0
    %1095 = vmatprep.mubr.f32.mxu0 %v1014
    %1096 = vmatmul.mubr.f32.gmra.mxu0 %v982
    %v1097 = vpop.f32.mrf.mxu0
    %v1098 = vadd.f32 0.0, %v1097
    %v1099 = vpop.f32.mrf.mxu0
    %1100 = vdwg.mxu0
    %v1101 = vadd.f32 %v947, %v1083
    %v1102 = vadd.f32 %v952, %v1088
    %v1103 = vadd.f32 %v957, %v1093
    %v1104 = vadd.f32 %v962, %v1098
    %v1105 = vld [vmem:[%s7] sm:$0x1]
    %v1106 = vld [vmem:[%s8] sm:$0x1]
    %v1107 = vadd.f32 %v1101, %v1102
    %v1108 = vadd.f32 %v1107, %v1103
    %v1109 = vadd.f32 %v1108, %v1104
    %v1110 = vrot.slane %v1109, 4
    %v1111 = vadd.f32 %v1109, %v1110
    %v1112 = vrot.slane %v1111, 2
    %v1113 = vadd.f32 %v1111, %v1112
    %v1114 = vrot.slane %v1113, 1
    %v1115 = vadd.f32 %v1113, %v1114
    %v1116 = vmul.f32 %v1101, %v1101
    %v1117 = vmul.f32 %v1102, %v1102
    %v1118 = vmul.f32 %v1103, %v1103
    %v1119 = vmul.f32 %v1104, %v1104
    %v1120 = vadd.f32 %v1116, %v1117
    %v1121 = vadd.f32 %v1120, %v1118
    %v1122 = vadd.f32 %v1121, %v1119
    %v1123 = vrot.slane %v1122, 4
    %v1124 = vadd.f32 %v1122, %v1123
    %v1125 = vrot.slane %v1124, 2
    %v1126 = vadd.f32 %v1124, %v1125
    %v1127 = vrot.slane %v1126, 1
    %v1128 = vadd.f32 %v1126, %v1127
    %1129 = vmatprep.subr.mxu0 0.0
    %1130 = vmatpush1.msra.mxu0 %v101
    %1131 = vmatprep.subr.mxu0 0.0
    %1132 = vmatpush1.msra.mxu0 %v100
    %1133 = vmatprep.subr.mxu0 0.0
    %1134 = vmatpush1.msra.mxu0 %v99
    %1135 = vmatprep.subr.mxu0 0.0
    %1136 = vmatpush1.msra.mxu0 %v98
    %1137 = vmatprep.subr.mxu0 0.0
    %1138 = vmatpush1.msra.mxu0 %v97
    %1139 = vmatprep.subr.mxu0 0.0
    %1140 = vmatpush1.msra.mxu0 %v96
    %1141 = vmatprep.subr.mxu0 0.0
    %1142 = vmatpush1.msra.mxu0 %v95
    %1143 = vmatprep.subr.mxu0 0.0
    %1144 = vmatpush1.msra.mxu0 %v94
    %1145 = vmatprep.subr.mxu0 0.0
    %1146 = vmatpush1.msra.mxu0 %v93
    %1147 = vmatprep.subr.mxu0 0.0
    %1148 = vmatpush1.msra.mxu0 %v92
    %1149 = vmatprep.subr.mxu0 0.0
    %1150 = vmatpush1.msra.mxu0 %v91
    %1151 = vmatprep.subr.mxu0 0.0
    %1152 = vmatpush1.msra.mxu0 %v90
    %1153 = vmatprep.subr.mxu0 0.0
    %1154 = vmatpush1.msra.mxu0 %v89
    %1155 = vmatprep.subr.mxu0 0.0
    %1156 = vmatpush1.msra.mxu0 %v88
    %1157 = vmatprep.subr.mxu0 0.0
    %1158 = vmatpush1.msra.mxu0 %v87
    %1159 = vmatprep.subr.mxu0 0.0
    %1160 = vmatpush1.msra.mxu0 %v86
    %1161 = vmatprep.subr.mxu0 0.0
    %1162 = vmatpush2.msra.mxu0 0.0
    %1163 = vmatprep.subr.mxu0 0.0
    %1164 = vmatpush2.msra.mxu0 0.0
    %1165 = vmatprep.subr.mxu0 0.0
    %1166 = vmatpush2.msra.mxu0 0.0
    %1167 = vmatprep.subr.mxu0 0.0
    %1168 = vmatpush2.msra.mxu0 0.0
    %1169 = vmatprep.subr.mxu0 0.0
    %1170 = vmatpush2.msra.mxu0 0.0
    %1171 = vmatprep.subr.mxu0 0.0
    %1172 = vmatpush2.msra.mxu0 0.0
    %1173 = vmatprep.subr.mxu0 0.0
    %1174 = vmatpush2.msra.mxu0 0.0
    %1175 = vmatprep.subr.mxu0 0.0
    %1176 = vmatpush2.msra.mxu0 0.0
    %1177 = vmatprep.subr.mxu0 0.0
    %1178 = vmatpush2.msra.mxu0 0.0
    %1179 = vmatprep.subr.mxu0 0.0
    %1180 = vmatpush2.msra.mxu0 0.0
    %1181 = vmatprep.subr.mxu0 0.0
    %1182 = vmatpush2.msra.mxu0 0.0
    %1183 = vmatprep.subr.mxu0 0.0
    %1184 = vmatpush2.msra.mxu0 0.0
    %1185 = vmatprep.subr.mxu0 0.0
    %1186 = vmatpush2.msra.mxu0 0.0
    %1187 = vmatprep.subr.mxu0 0.0
    %1188 = vmatpush2.msra.mxu0 0.0
    %1189 = vmatprep.subr.mxu0 0.0
    %1190 = vmatpush2.msra.mxu0 0.0
    %1191 = vmatprep.subr.mxu0 0.0
    %1192 = vmatpush2.msra.mxu0 0.0
    %1193 = vmatprep.mubr.f32.mxu0 0.0
    %1194 = vmatmul.mubr.f32.gmra.mxu0 %v1115
    %v1195 = vpop.f32.mrf.mxu0
    %v1196 = vadd.f32 0.0, %v1195
    %v1197 = vpop.f32.mrf.mxu0
    %1198 = vdwg.mxu0
    %1199 = vmatprep.subr.mxu0 0.0
    %1200 = vmatpush1.msra.mxu0 %v101
    %1201 = vmatprep.subr.mxu0 0.0
    %1202 = vmatpush1.msra.mxu0 %v100
    %1203 = vmatprep.subr.mxu0 0.0
    %1204 = vmatpush1.msra.mxu0 %v99
    %1205 = vmatprep.subr.mxu0 0.0
    %1206 = vmatpush1.msra.mxu0 %v98
    %1207 = vmatprep.subr.mxu0 0.0
    %1208 = vmatpush1.msra.mxu0 %v97
    %1209 = vmatprep.subr.mxu0 0.0
    %1210 = vmatpush1.msra.mxu0 %v96
    %1211 = vmatprep.subr.mxu0 0.0
    %1212 = vmatpush1.msra.mxu0 %v95
    %1213 = vmatprep.subr.mxu0 0.0
    %1214 = vmatpush1.msra.mxu0 %v94
    %1215 = vmatprep.subr.mxu0 0.0
    %1216 = vmatpush1.msra.mxu0 %v93
    %1217 = vmatprep.subr.mxu0 0.0
    %1218 = vmatpush1.msra.mxu0 %v92
    %1219 = vmatprep.subr.mxu0 0.0
    %1220 = vmatpush1.msra.mxu0 %v91
    %1221 = vmatprep.subr.mxu0 0.0
    %1222 = vmatpush1.msra.mxu0 %v90
    %1223 = vmatprep.subr.mxu0 0.0
    %1224 = vmatpush1.msra.mxu0 %v89
    %1225 = vmatprep.subr.mxu0 0.0
    %1226 = vmatpush1.msra.mxu0 %v88
    %1227 = vmatprep.subr.mxu0 0.0
    %1228 = vmatpush1.msra.mxu0 %v87
    %1229 = vmatprep.subr.mxu0 0.0
    %1230 = vmatpush1.msra.mxu0 %v86
    %1231 = vmatprep.subr.mxu0 0.0
    %1232 = vmatpush2.msra.mxu0 0.0
    %1233 = vmatprep.subr.mxu0 0.0
    %1234 = vmatpush2.msra.mxu0 0.0
    %1235 = vmatprep.subr.mxu0 0.0
    %1236 = vmatpush2.msra.mxu0 0.0
    %1237 = vmatprep.subr.mxu0 0.0
    %1238 = vmatpush2.msra.mxu0 0.0
    %1239 = vmatprep.subr.mxu0 0.0
    %1240 = vmatpush2.msra.mxu0 0.0
    %1241 = vmatprep.subr.mxu0 0.0
    %1242 = vmatpush2.msra.mxu0 0.0
    %1243 = vmatprep.subr.mxu0 0.0
    %1244 = vmatpush2.msra.mxu0 0.0
    %1245 = vmatprep.subr.mxu0 0.0
    %1246 = vmatpush2.msra.mxu0 0.0
    %1247 = vmatprep.subr.mxu0 0.0
    %1248 = vmatpush2.msra.mxu0 0.0
    %1249 = vmatprep.subr.mxu0 0.0
    %1250 = vmatpush2.msra.mxu0 0.0
    %1251 = vmatprep.subr.mxu0 0.0
    %1252 = vmatpush2.msra.mxu0 0.0
    %1253 = vmatprep.subr.mxu0 0.0
    %1254 = vmatpush2.msra.mxu0 0.0
    %1255 = vmatprep.subr.mxu0 0.0
    %1256 = vmatpush2.msra.mxu0 0.0
    %1257 = vmatprep.subr.mxu0 0.0
    %1258 = vmatpush2.msra.mxu0 0.0
    %1259 = vmatprep.subr.mxu0 0.0
    %1260 = vmatpush2.msra.mxu0 0.0
    %1261 = vmatprep.subr.mxu0 0.0
    %1262 = vmatpush2.msra.mxu0 0.0
    %1263 = vmatprep.mubr.f32.mxu0 0.0
    %1264 = vmatmul.mubr.f32.gmra.mxu0 %v1128
    %v1265 = vpop.f32.mrf.mxu0
    %v1266 = vadd.f32 0.0, %v1265
    %v1267 = vpop.f32.mrf.mxu0
    %1268 = vdwg.mxu0
    %v1269 = vmul.f32 %v1196, 0.001953125
    %v1270 = vmul.f32 %v1266, 0.001953125
    %v1271 = vmul.f32 %v1269, %v1269
    %v1272 = vsub.f32 %v1270, %v1271
    %v1273 = vmax.f32 %v1272, 0.0
    %v1274 = vadd.f32 %v1273, 1e-05
    %v1275 = vrsqrt.pop %v1274
    %v1276 = vlaneseq
    %v1277 = vshrl.u32 %v1276, 7
    %v1278 = vsub.s32 0, %v1277
    %v1279 = vrot.slane %v1269, %v1278
    %v1280 = vsub.f32 %v1101, %v1279
    %v1281 = vsub.f32 %v1102, %v1279
    %v1282 = vsub.f32 %v1103, %v1279
    %v1283 = vsub.f32 %v1104, %v1279
    %v1284 = vmul.f32 %v1275, %v1105
    %v1285 = vlaneseq
    %v1286 = vshrl.u32 %v1285, 7
    %v1287 = vsub.s32 0, %v1286
    %v1288 = vrot.slane %v1284, %v1287
    %v1289 = vmul.f32 %v1280, %v1288
    %v1290 = vmul.f32 %v1281, %v1288
    %v1291 = vmul.f32 %v1282, %v1288
    %v1292 = vmul.f32 %v1283, %v1288
    %v1294 = vlaneseq
    %v1295 = vshrl.u32 %v1294, 7
    %v1296 = vsub.s32 0, %v1295
    %v1297 = vrot.slane %v1106, %v1296
    %v1299 = vadd.f32 %v1289, %v1297
    %v1300 = vadd.f32 %v1290, %v1297
    %v1301 = vadd.f32 %v1291, %v1297
    %v1302 = vadd.f32 %v1292, %v1297
    %v1303 = vld [vmem:[%s3] sm:$0xff]
    %v1304 = vld [vmem:[%s3 + $0x8] sm:$0xff]
    %v1305 = vld [vmem:[%s3 + $0x10] sm:$0xff]
    %v1306 = vld [vmem:[%s3 + $0x18] sm:$0xff]
    %v1307 = vld [vmem:[%s3 + $0x20] sm:$0xff]
    %v1308 = vld [vmem:[%s3 + $0x28] sm:$0xff]
    %v1309 = vld [vmem:[%s3 + $0x30] sm:$0xff]
    %v1310 = vld [vmem:[%s3 + $0x38] sm:$0xff]
    %v1311 = vld [vmem:[%s3 + $0x40] sm:$0xff]
    %1312 = vmatprep.subr.mxu0 0.0
    %1313 = vmatpush1.msra.mxu0 0.0
    %1314 = vmatprep.subr.mxu0 0.0
    %1315 = vmatpush1.msra.mxu0 0.0
    %1316 = vmatprep.subr.mxu0 0.0
    %1317 = vmatpush1.msra.mxu0 0.0
    %1318 = vmatprep.subr.mxu0 0.0
    %1319 = vmatpush1.msra.mxu0 0.0
    %1320 = vmatprep.subr.mxu0 0.0
    %1321 = vmatpush1.msra.mxu0 0.0
    %1322 = vmatprep.subr.mxu0 0.0
    %1323 = vmatpush1.msra.mxu0 0.0
    %1324 = vmatprep.subr.mxu0 0.0
    %1325 = vmatpush1.msra.mxu0 0.0
    %1326 = vmatprep.subr.mxu0 0.0
    %1327 = vmatpush1.msra.mxu0 %v1311
    %1328 = vmatprep.subr.mxu0 0.0
    %1329 = vmatpush1.msra.mxu0 %v1310
    %1330 = vmatprep.subr.mxu0 0.0
    %1331 = vmatpush1.msra.mxu0 %v1309
    %1332 = vmatprep.subr.mxu0 0.0
    %1333 = vmatpush1.msra.mxu0 %v1308
    %1334 = vmatprep.subr.mxu0 0.0
    %1335 = vmatpush1.msra.mxu0 %v1307
    %1336 = vmatprep.subr.mxu0 0.0
    %1337 = vmatpush1.msra.mxu0 %v1306
    %1338 = vmatprep.subr.mxu0 0.0
    %1339 = vmatpush1.msra.mxu0 %v1305
    %1340 = vmatprep.subr.mxu0 0.0
    %1341 = vmatpush1.msra.mxu0 %v1304
    %1342 = vmatprep.subr.mxu0 0.0
    %1343 = vmatpush1.msra.mxu0 %v1303
    %1344 = vmatprep.subr.mxu0 0.0
    %1345 = vmatpush2.msra.mxu0 0.0
    %1346 = vmatprep.subr.mxu0 0.0
    %1347 = vmatpush2.msra.mxu0 0.0
    %1348 = vmatprep.subr.mxu0 0.0
    %1349 = vmatpush2.msra.mxu0 0.0
    %1350 = vmatprep.subr.mxu0 0.0
    %1351 = vmatpush2.msra.mxu0 0.0
    %1352 = vmatprep.subr.mxu0 0.0
    %1353 = vmatpush2.msra.mxu0 0.0
    %1354 = vmatprep.subr.mxu0 0.0
    %1355 = vmatpush2.msra.mxu0 0.0
    %1356 = vmatprep.subr.mxu0 0.0
    %1357 = vmatpush2.msra.mxu0 0.0
    %1358 = vmatprep.subr.mxu0 0.0
    %1359 = vmatpush2.msra.mxu0 0.0
    %1360 = vmatprep.subr.mxu0 0.0
    %1361 = vmatpush2.msra.mxu0 0.0
    %1362 = vmatprep.subr.mxu0 0.0
    %1363 = vmatpush2.msra.mxu0 0.0
    %1364 = vmatprep.subr.mxu0 0.0
    %1365 = vmatpush2.msra.mxu0 0.0
    %1366 = vmatprep.subr.mxu0 0.0
    %1367 = vmatpush2.msra.mxu0 0.0
    %1368 = vmatprep.subr.mxu0 0.0
    %1369 = vmatpush2.msra.mxu0 0.0
    %1370 = vmatprep.subr.mxu0 0.0
    %1371 = vmatpush2.msra.mxu0 0.0
    %1372 = vmatprep.subr.mxu0 0.0
    %1373 = vmatpush2.msra.mxu0 0.0
    %1374 = vmatprep.subr.mxu0 0.0
    %1375 = vmatpush2.msra.mxu0 0.0
    %1376 = vmatprep.mubr.f32.mxu0 0.0
    %1377 = vmatmul.mubr.f32.gmra.mxu0 %v139
    %v1378 = vpop.f32.mrf.mxu0
    %v1379 = vadd.f32 0.0, %v1378
    %v1380 = vpop.f32.mrf.mxu0
    %1381 = vmatprep.mubr.f32.mxu0 0.0
    %1382 = vmatmul.mubr.f32.gmra.mxu0 %v141
    %v1383 = vpop.f32.mrf.mxu0
    %v1384 = vadd.f32 0.0, %v1383
    %v1385 = vpop.f32.mrf.mxu0
    %1386 = vmatprep.mubr.f32.mxu0 0.0
    %1387 = vmatmul.mubr.f32.gmra.mxu0 %v143
    %v1388 = vpop.f32.mrf.mxu0
    %v1389 = vadd.f32 0.0, %v1388
    %v1390 = vpop.f32.mrf.mxu0
    %1391 = vmatprep.mubr.f32.mxu0 0.0
    %1392 = vmatmul.mubr.f32.gmra.mxu0 %v145
    %v1393 = vpop.f32.mrf.mxu0
    %v1394 = vadd.f32 0.0, %v1393
    %v1395 = vpop.f32.mrf.mxu0
    %1396 = vdwg.mxu0
    %v1397 = vld [vmem:[%s9] sm:$0x1]
    %v1398 = vld [vmem:[%s10] sm:$0x1]
    %v1399 = vadd.f32 %v1379, %v1384
    %v1400 = vadd.f32 %v1399, %v1389
    %v1401 = vadd.f32 %v1400, %v1394
    %v1402 = vrot.slane %v1401, 4
    %v1403 = vadd.f32 %v1401, %v1402
    %v1404 = vrot.slane %v1403, 2
    %v1405 = vadd.f32 %v1403, %v1404
    %v1406 = vrot.slane %v1405, 1
    %v1407 = vadd.f32 %v1405, %v1406
    %v1408 = vmul.f32 %v1379, %v1379
    %v1409 = vmul.f32 %v1384, %v1384
    %v1410 = vmul.f32 %v1389, %v1389
    %v1411 = vmul.f32 %v1394, %v1394
    %v1412 = vadd.f32 %v1408, %v1409
    %v1413 = vadd.f32 %v1412, %v1410
    %v1414 = vadd.f32 %v1413, %v1411
    %v1415 = vrot.slane %v1414, 4
    %v1416 = vadd.f32 %v1414, %v1415
    %v1417 = vrot.slane %v1416, 2
    %v1418 = vadd.f32 %v1416, %v1417
    %v1419 = vrot.slane %v1418, 1
    %v1420 = vadd.f32 %v1418, %v1419
    %1421 = vmatprep.subr.mxu0 0.0
    %1422 = vmatpush1.msra.mxu0 %v101
    %1423 = vmatprep.subr.mxu0 0.0
    %1424 = vmatpush1.msra.mxu0 %v100
    %1425 = vmatprep.subr.mxu0 0.0
    %1426 = vmatpush1.msra.mxu0 %v99
    %1427 = vmatprep.subr.mxu0 0.0
    %1428 = vmatpush1.msra.mxu0 %v98
    %1429 = vmatprep.subr.mxu0 0.0
    %1430 = vmatpush1.msra.mxu0 %v97
    %1431 = vmatprep.subr.mxu0 0.0
    %1432 = vmatpush1.msra.mxu0 %v96
    %1433 = vmatprep.subr.mxu0 0.0
    %1434 = vmatpush1.msra.mxu0 %v95
    %1435 = vmatprep.subr.mxu0 0.0
    %1436 = vmatpush1.msra.mxu0 %v94
    %1437 = vmatprep.subr.mxu0 0.0
    %1438 = vmatpush1.msra.mxu0 %v93
    %1439 = vmatprep.subr.mxu0 0.0
    %1440 = vmatpush1.msra.mxu0 %v92
    %1441 = vmatprep.subr.mxu0 0.0
    %1442 = vmatpush1.msra.mxu0 %v91
    %1443 = vmatprep.subr.mxu0 0.0
    %1444 = vmatpush1.msra.mxu0 %v90
    %1445 = vmatprep.subr.mxu0 0.0
    %1446 = vmatpush1.msra.mxu0 %v89
    %1447 = vmatprep.subr.mxu0 0.0
    %1448 = vmatpush1.msra.mxu0 %v88
    %1449 = vmatprep.subr.mxu0 0.0
    %1450 = vmatpush1.msra.mxu0 %v87
    %1451 = vmatprep.subr.mxu0 0.0
    %1452 = vmatpush1.msra.mxu0 %v86
    %1453 = vmatprep.subr.mxu0 0.0
    %1454 = vmatpush2.msra.mxu0 0.0
    %1455 = vmatprep.subr.mxu0 0.0
    %1456 = vmatpush2.msra.mxu0 0.0
    %1457 = vmatprep.subr.mxu0 0.0
    %1458 = vmatpush2.msra.mxu0 0.0
    %1459 = vmatprep.subr.mxu0 0.0
    %1460 = vmatpush2.msra.mxu0 0.0
    %1461 = vmatprep.subr.mxu0 0.0
    %1462 = vmatpush2.msra.mxu0 0.0
    %1463 = vmatprep.subr.mxu0 0.0
    %1464 = vmatpush2.msra.mxu0 0.0
    %1465 = vmatprep.subr.mxu0 0.0
    %1466 = vmatpush2.msra.mxu0 0.0
    %1467 = vmatprep.subr.mxu0 0.0
    %1468 = vmatpush2.msra.mxu0 0.0
    %1469 = vmatprep.subr.mxu0 0.0
    %1470 = vmatpush2.msra.mxu0 0.0
    %1471 = vmatprep.subr.mxu0 0.0
    %1472 = vmatpush2.msra.mxu0 0.0
    %1473 = vmatprep.subr.mxu0 0.0
    %1474 = vmatpush2.msra.mxu0 0.0
    %1475 = vmatprep.subr.mxu0 0.0
    %1476 = vmatpush2.msra.mxu0 0.0
    %1477 = vmatprep.subr.mxu0 0.0
    %1478 = vmatpush2.msra.mxu0 0.0
    %1479 = vmatprep.subr.mxu0 0.0
    %1480 = vmatpush2.msra.mxu0 0.0
    %1481 = vmatprep.subr.mxu0 0.0
    %1482 = vmatpush2.msra.mxu0 0.0
    %1483 = vmatprep.subr.mxu0 0.0
    %1484 = vmatpush2.msra.mxu0 0.0
    %1485 = vmatprep.mubr.f32.mxu0 0.0
    %1486 = vmatmul.mubr.f32.gmra.mxu0 %v1407
    %v1487 = vpop.f32.mrf.mxu0
    %v1488 = vadd.f32 0.0, %v1487
    %v1489 = vpop.f32.mrf.mxu0
    %1490 = vdwg.mxu0
    %1491 = vmatprep.subr.mxu0 0.0
    %1492 = vmatpush1.msra.mxu0 %v101
    %1493 = vmatprep.subr.mxu0 0.0
    %1494 = vmatpush1.msra.mxu0 %v100
    %1495 = vmatprep.subr.mxu0 0.0
    %1496 = vmatpush1.msra.mxu0 %v99
    %1497 = vmatprep.subr.mxu0 0.0
    %1498 = vmatpush1.msra.mxu0 %v98
    %1499 = vmatprep.subr.mxu0 0.0
    %1500 = vmatpush1.msra.mxu0 %v97
    %1501 = vmatprep.subr.mxu0 0.0
    %1502 = vmatpush1.msra.mxu0 %v96
    %1503 = vmatprep.subr.mxu0 0.0
    %1504 = vmatpush1.msra.mxu0 %v95
    %1505 = vmatprep.subr.mxu0 0.0
    %1506 = vmatpush1.msra.mxu0 %v94
    %1507 = vmatprep.subr.mxu0 0.0
    %1508 = vmatpush1.msra.mxu0 %v93
    %1509 = vmatprep.subr.mxu0 0.0
    %1510 = vmatpush1.msra.mxu0 %v92
    %1511 = vmatprep.subr.mxu0 0.0
    %1512 = vmatpush1.msra.mxu0 %v91
    %1513 = vmatprep.subr.mxu0 0.0
    %1514 = vmatpush1.msra.mxu0 %v90
    %1515 = vmatprep.subr.mxu0 0.0
    %1516 = vmatpush1.msra.mxu0 %v89
    %1517 = vmatprep.subr.mxu0 0.0
    %1518 = vmatpush1.msra.mxu0 %v88
    %1519 = vmatprep.subr.mxu0 0.0
    %1520 = vmatpush1.msra.mxu0 %v87
    %1521 = vmatprep.subr.mxu0 0.0
    %1522 = vmatpush1.msra.mxu0 %v86
    %1523 = vmatprep.subr.mxu0 0.0
    %1524 = vmatpush2.msra.mxu0 0.0
    %1525 = vmatprep.subr.mxu0 0.0
    %1526 = vmatpush2.msra.mxu0 0.0
    %1527 = vmatprep.subr.mxu0 0.0
    %1528 = vmatpush2.msra.mxu0 0.0
    %1529 = vmatprep.subr.mxu0 0.0
    %1530 = vmatpush2.msra.mxu0 0.0
    %1531 = vmatprep.subr.mxu0 0.0
    %1532 = vmatpush2.msra.mxu0 0.0
    %1533 = vmatprep.subr.mxu0 0.0
    %1534 = vmatpush2.msra.mxu0 0.0
    %1535 = vmatprep.subr.mxu0 0.0
    %1536 = vmatpush2.msra.mxu0 0.0
    %1537 = vmatprep.subr.mxu0 0.0
    %1538 = vmatpush2.msra.mxu0 0.0
    %1539 = vmatprep.subr.mxu0 0.0
    %1540 = vmatpush2.msra.mxu0 0.0
    %1541 = vmatprep.subr.mxu0 0.0
    %1542 = vmatpush2.msra.mxu0 0.0
    %1543 = vmatprep.subr.mxu0 0.0
    %1544 = vmatpush2.msra.mxu0 0.0
    %1545 = vmatprep.subr.mxu0 0.0
    %1546 = vmatpush2.msra.mxu0 0.0
    %1547 = vmatprep.subr.mxu0 0.0
    %1548 = vmatpush2.msra.mxu0 0.0
    %1549 = vmatprep.subr.mxu0 0.0
    %1550 = vmatpush2.msra.mxu0 0.0
    %1551 = vmatprep.subr.mxu0 0.0
    %1552 = vmatpush2.msra.mxu0 0.0
    %1553 = vmatprep.subr.mxu0 0.0
    %1554 = vmatpush2.msra.mxu0 0.0
    %1555 = vmatprep.mubr.f32.mxu0 0.0
    %1556 = vmatmul.mubr.f32.gmra.mxu0 %v1420
    %v1557 = vpop.f32.mrf.mxu0
    %v1558 = vadd.f32 0.0, %v1557
    %v1559 = vpop.f32.mrf.mxu0
    %1560 = vdwg.mxu0
    %v1561 = vmul.f32 %v1488, 0.001953125
    %v1562 = vmul.f32 %v1558, 0.001953125
    %v1563 = vmul.f32 %v1561, %v1561
    %v1564 = vsub.f32 %v1562, %v1563
    %v1565 = vmax.f32 %v1564, 0.0
    %v1566 = vadd.f32 %v1565, 1e-05
    %v1567 = vrsqrt.pop %v1566
    %v1568 = vlaneseq
    %v1569 = vshrl.u32 %v1568, 7
    %v1570 = vsub.s32 0, %v1569
    %v1571 = vrot.slane %v1561, %v1570
    %v1572 = vsub.f32 %v1379, %v1571
    %v1573 = vsub.f32 %v1384, %v1571
    %v1574 = vsub.f32 %v1389, %v1571
    %v1575 = vsub.f32 %v1394, %v1571
    %v1576 = vmul.f32 %v1567, %v1397
    %v1577 = vlaneseq
    %v1578 = vshrl.u32 %v1577, 7
    %v1579 = vsub.s32 0, %v1578
    %v1580 = vrot.slane %v1576, %v1579
    %v1581 = vmul.f32 %v1572, %v1580
    %v1582 = vmul.f32 %v1573, %v1580
    %v1583 = vmul.f32 %v1574, %v1580
    %v1584 = vmul.f32 %v1575, %v1580
    %v1586 = vlaneseq
    %v1587 = vshrl.u32 %v1586, 7
    %v1588 = vsub.s32 0, %v1587
    %v1589 = vrot.slane %v1398, %v1588
    %v1591 = vadd.f32 %v1581, %v1589
    %v1592 = vadd.f32 %v1582, %v1589
    %v1593 = vadd.f32 %v1583, %v1589
    %v1594 = vadd.f32 %v1584, %v1589
    %v1595 = vadd.f32 %v1299, %v1591
    %v1596 = vadd.f32 %v1300, %v1592
    %v1597 = vadd.f32 %v1301, %v1593
    %v1598 = vadd.f32 %v1302, %v1594
    %v1599 = vmax.f32 %v1595, 0.0
    %v1600 = vmax.f32 %v1596, 0.0
    %v1601 = vmax.f32 %v1597, 0.0
    %v1602 = vmax.f32 %v1598, 0.0
    %1603 = vst [vmem:[#allocation8] sm:$0xff] %v1599
    %1604 = vst [vmem:[#allocation8 + $0x8] sm:$0xff] %v1600
    %1605 = vst [vmem:[#allocation8 + $0x10] sm:$0xff] %v1601
    %1606 = vst [vmem:[#allocation8 + $0x18] sm:$0xff] %v1602
    // Predicated region
    $region58: #{tpu_custom_call.1} parent=1 // pred_check
      _
    $region59: #{tpu_custom_call.1} parent=1 // pred_check_branch
      %1608 = sbr.rel (0) target = $region61
    $region60: #{tpu_custom_call.1} parent=1 // pred_region
      %s1610 = ssub.s32 512, 512
      %1611 = vsyncadd [#allocation4], %s1610
      %s1612 = sshll.u32 [#allocation8], 4
      %s1613 = int_to_ptr.vmem [resolvable:$true] %s1612
      %1618 = dma.vmem_to_hbm [thread:$0]  %s1613, 512, %s11, [#allocation4], 128, 128, 8
    $region61: #{tpu_custom_call.1} parent=1 // pred_fallthru
      _
    // Predicated region
    $region62: #{tpu_custom_call.1} parent=1 // pred_check
      _
    $region63: #{tpu_custom_call.1} parent=1 // pred_check_branch
      %1620 = sbr.rel (0) target = $region65
    $region64: #{tpu_custom_call.1} parent=1 // pred_region
      %1621 = dma.done [#allocation4], 512
    $region65: #{tpu_custom_call.1} parent=1 // pred_fallthru
      _
    %1622 = vsyncpa [#allocation3], 1
    %1623 = vsyncpa [#allocation6], 1
    %1624 = vsyncpa [#allocation4], 1

</llo_original>
